<compile_context>
chip_gen: v7x
topology: tpu7x:2x2x1
jax: 0.10.0
libtpu: 0.0.40
codegen_flags: <defaults>
</compile_context>

<pallas_src>
import numpy as np
import jax
import jax.numpy as jnp
from jax.experimental import pallas as pl
from jax.experimental.pallas import tpu as pltpu

# ----------------------------------------------------------------------------
# Constants (match the PyTorch module)
# ----------------------------------------------------------------------------
HAND_TIP_IDS = {'thumb': 744, 'index': 320, 'middle': 443, 'ring': 554, 'pinky': 671}
LEFT_WRIST_BASE_LOC = jnp.array([[-0.0957, 0.0064, 0.0062]], dtype=jnp.float32)
RIGHT_WRIST_BASE_LOC = jnp.array([[0.0957, 0.0064, 0.0062]], dtype=jnp.float32)

NUM_VERTS = 778
NUM_JOINTS = 16                       # MANO: 1 wrist + 15 finger joints
NUM_BETAS = 10
POSE_FEAT = (NUM_JOINTS - 1) * 9      # 135
FEAT_DIM = NUM_BETAS + POSE_FEAT      # 145  (fused blendshape contraction dim)
V_PAD = 896                           # 778 padded to a multiple of 128 (lane axis)
VF = 3 * V_PAD                        # coordinate-fused flat vertex axis (2688)
N_ELEMS = 12                          # top 3 rows of each 4x4 transform (3*4)
MAX_TILE_B = 128                      # batch rows per grid step (cap for v7x VMEM)
MANO_PARENTS = np.array([-1, 0, 1, 2, 0, 4, 5, 0, 7, 8, 0, 10, 11, 0, 13, 14])


def _round_up(x, m):
    return ((x + m - 1) // m) * m


# ----------------------------------------------------------------------------
# Pallas kernel: fused blendshapes + LBS skinning for one batch tile
# ----------------------------------------------------------------------------
def _make_skin_kernel(tile_b):
    def kernel(feat_ref, A_ref, vt_ref, bsd_ref, Wt_ref, verts_ref):
        # v_posed = v_template + [betas | pose_feature] @ [shapedirs ; posedirs]
        # One (TB,145) x (145, 3*Vp) bf16 dot, f32 accumulation.
        blend = jnp.dot(feat_ref[...].astype(jnp.bfloat16), bsd_ref[...],
                        preferred_element_type=jnp.float32)                     # (TB, 3*Vp)
        v_posed = vt_ref[...] + blend                                           # (1,VF) bcast add

        # All 12 transform elements of every batch row in the tile in ONE matmul.
        # A_ref rows are element-major: row = e*tile_b + b_local, e = 4*r + k.
        # The (transl - wrist) offset is already folded into elements 3/7/11.
        Tf = jnp.dot(A_ref[...], Wt_ref[...], preferred_element_type=jnp.float32)  # (12*TB, Vp)

        for c in range(3):
            acc = Tf[(4 * c + 3) * tile_b:(4 * c + 4) * tile_b, :]              # translation
            for k in range(3):
                acc = acc + (Tf[(4 * c + k) * tile_b:(4 * c + k + 1) * tile_b, :]
                             * v_posed[:, k * V_PAD:(k + 1) * V_PAD])
            verts_ref[:, c * V_PAD:(c + 1) * V_PAD] = acc                       # aligned slab store
    return kernel


def _lbs_skin(feat_p, A_lhs, vt_flat, bsd_flat, W_t, tile_b):
    B_pad = feat_p.shape[0]
    n_tiles = B_pad // tile_b
    return pl.pallas_call(
        _make_skin_kernel(tile_b),
        grid=(n_tiles,),
        in_specs=[
            pl.BlockSpec((tile_b, FEAT_DIM), lambda t: (t, 0)),
            pl.BlockSpec((N_ELEMS * tile_b, NUM_JOINTS), lambda t: (t, 0)),
            pl.BlockSpec((1, VF), lambda t: (0, 0)),
            pl.BlockSpec((FEAT_DIM, VF), lambda t: (0, 0)),
            pl.BlockSpec((NUM_JOINTS, V_PAD), lambda t: (0, 0)),
        ],
        out_specs=pl.BlockSpec((tile_b, VF), lambda t: (t, 0)),
        out_shape=jax.ShapeDtypeStruct((B_pad, VF), jnp.float32),
        compiler_params=pltpu.CompilerParams(
            dimension_semantics=("parallel",),
            vmem_limit_bytes=32 * 1024 * 1024),
    )(feat_p, A_lhs, vt_flat, bsd_flat, W_t)


# ----------------------------------------------------------------------------
# Small sequential glue (plain JAX -- 16 joints only)
# ----------------------------------------------------------------------------
def batch_rodrigues(rot_vecs):
    """(N, 3) axis-angle -> (N, 3, 3) rotation matrices (smplx.lbs.batch_rodrigues)."""
    angle = jnp.linalg.norm(rot_vecs + 1e-8, axis=1, keepdims=True)          # (N, 1)
    rot_dir = rot_vecs / angle
    cos = jnp.cos(angle)[:, None, :]
    sin = jnp.sin(angle)[:, None, :]
    rx, ry, rz = rot_dir[:, 0], rot_dir[:, 1], rot_dir[:, 2]
    zeros = jnp.zeros_like(rx)
    K = jnp.stack([zeros, -rz, ry, rz, zeros, -rx, -ry, rx, zeros], axis=1).reshape(-1, 3, 3)
    ident = jnp.eye(3, dtype=rot_vecs.dtype)[None]
    return ident + sin * K + (1.0 - cos) * jnp.matmul(K, K)


def batch_rigid_transform(rot_mats, joints, parents):
    """smplx.lbs.batch_rigid_transform: kinematic chain of 4x4 transforms."""
    B, J, _ = joints.shape
    rel_joints = joints.at[:, 1:].add(-joints[:, parents[1:]])
    tm = jnp.concatenate([rot_mats, rel_joints[..., None]], axis=-1)          # (B, J, 3, 4)
    bottom = jnp.broadcast_to(jnp.array([0., 0., 0., 1.], jnp.float32), (B, J, 1, 4))
    tm = jnp.concatenate([tm, bottom], axis=-2)                               # (B, J, 4, 4)
    chain = [tm[:, 0]]
    for i in range(1, J):
        chain.append(jnp.matmul(chain[parents[i]], tm[:, i]))
    transforms = jnp.stack(chain, axis=1)                                     # (B, J, 4, 4)
    posed_joints = transforms[:, :, :3, 3]
    joints_h = jnp.concatenate([joints, jnp.zeros((B, J, 1), joints.dtype)], axis=2)[..., None]
    init_bone = jnp.matmul(transforms, joints_h)                              # (B, J, 4, 1)
    rel_transforms = transforms - jnp.pad(init_bone, ((0, 0), (0, 0), (0, 0), (3, 0)))
    return posed_joints, rel_transforms


def _pad_batch(x, b_pad):
    return jnp.pad(x, ((0, b_pad - x.shape[0]),) + ((0, 0),) * (x.ndim - 1))


# ----------------------------------------------------------------------------
# Forward pass (BodyModel.forward for model_type == 'mano')
# ----------------------------------------------------------------------------
def mano_forward_pallas(params, betas, global_orient, hand_pose, transl,
                        is_rhand=True, no_shift=False, return_finger_tips=False):
    B = betas.shape[0]
    tile_b = min(MAX_TILE_B, _round_up(B, 8))     # multiple of 8; big tiles for big batches
    B_pad = _round_up(B, tile_b)

    full_pose = jnp.concatenate([global_orient, hand_pose], axis=1) + params['pose_mean'][None]

    # Rest-pose joints via the analytically folded regressor (exact linear fold of
    # J_regressor into v_template/shapedirs).  Tiny -> plain XLA.
    j_rest = params['J_template'][None] + \
        jnp.dot(betas, params['J_shapedirs']).reshape(B, NUM_JOINTS, 3)

    rot_mats = batch_rodrigues(full_pose.reshape(-1, 3)).reshape(B, NUM_JOINTS, 3, 3)
    pose_feature = (rot_mats[:, 1:] - jnp.eye(3, dtype=jnp.float32)).reshape(B, POSE_FEAT)
    posed_joints, rel_transforms = batch_rigid_transform(rot_mats, j_rest, MANO_PARENTS)

    wrist = RIGHT_WRIST_BASE_LOC if is_rhand else LEFT_WRIST_BASE_LOC          # (1, 3)
    offset = transl - (0.0 if no_shift else 1.0) * wrist                       # (B, 3)

    # Fused blendshape LHS: [betas | pose_feature]  (B, 145).
    feat = jnp.concatenate([betas, pose_feature], axis=1)

    # Element-major LHS for the per-vertex-transform matmul:
    # tile-local row = e*tile_b + b_local, e = 4*r + k over the top 3 rows of the 4x4.
    # Fold offset into translation elements (3, 7, 11): exact because LBS weights
    # of every real vertex sum to 1 (padded vertices' weights sum to 0 -> stay 0).
    rel12 = rel_transforms[:, :, :3, :].reshape(B, NUM_JOINTS, N_ELEMS)
    off12 = jnp.zeros((B, N_ELEMS), jnp.float32)
    off12 = off12.at[:, 3].set(offset[:, 0])
    off12 = off12.at[:, 7].set(offset[:, 1])
    off12 = off12.at[:, 11].set(offset[:, 2])
    rel12 = rel12 + off12[:, None, :]
    rel12 = _pad_batch(rel12, B_pad)
    A_lhs = jnp.transpose(
        rel12.reshape(B_pad // tile_b, tile_b, NUM_JOINTS, N_ELEMS),
        (0, 3, 1, 2)).reshape(B_pad * N_ELEMS, NUM_JOINTS)

    verts_flat = _lbs_skin(
        _pad_batch(feat, B_pad), A_lhs,
        params['vt_flat'], params['bsd_flat'], params['W_t'], tile_b)

    vertices = jnp.transpose(verts_flat.reshape(B_pad, 3, V_PAD), (0, 2, 1))[:B, :NUM_VERTS]
    joints = posed_joints + offset[:, None, :]                                 # (B, 16, 3)

    if return_finger_tips:
        tip_idx = jnp.array(list(HAND_TIP_IDS.values()), dtype=jnp.int32)
        joints = jnp.concatenate([joints, vertices[:, tip_idx]], axis=1)       # (B, 21, 3)
    return vertices, joints, full_pose


def body_model_forward(params, input_dict, is_rhand=True, mesh_name='hand',
                       mesh_color=(0.5, 0.5, 0.5)):
    """Mirrors BodyModel.forward (mano branch)."""
    betas = input_dict['betas']
    global_orient = input_dict['global_orient']
    hand_pose = input_dict['hand_pose']
    transl = input_dict['transl']
    no_shift = bool(input_dict.get('no_shift', False))
    return_finger_tips = bool(input_dict.get('return_finger_tips', False))
    vertices, joints, full_pose = mano_forward_pallas(
        params, betas, global_orient, hand_pose, transl,
        is_rhand=is_rhand, no_shift=no_shift, return_finger_tips=return_finger_tips)
    # TODO(synk): skeleton_flag / produce_skeleton (host-side numpy graph walk) not ported.
    return {
        'mesh_name': mesh_name,
        'mesh_color': list(mesh_color),
        'vertices': vertices,
        'faces': params['faces'],
        'betas': betas,
        'joints': joints,
        'full_pose': full_pose,
        'root_orient': global_orient,
        'transl': transl,
        'skeleton_flag': False,
        'skeleton': None,
        'skeleton_name': mesh_name + '_skeleton',
    }


# ----------------------------------------------------------------------------
# Pure-JAX reference (for correctness checking)
# ----------------------------------------------------------------------------
def mano_forward_ref(raw, betas, global_orient, hand_pose, transl,
                     is_rhand=True, no_shift=False, return_finger_tips=False):
    B = betas.shape[0]
    full_pose = jnp.concatenate([global_orient, hand_pose], axis=1) + raw['pose_mean'][None]
    v_shaped = raw['v_template'][None] + jnp.einsum('bl,vcl->bvc', betas, raw['shapedirs'])
    j_rest = jnp.einsum('jv,bvc->bjc', raw['J_regressor'], v_shaped)
    rot_mats = batch_rodrigues(full_pose.reshape(-1, 3)).reshape(B, NUM_JOINTS, 3, 3)
    pf = (rot_mats[:, 1:] - jnp.eye(3, dtype=jnp.float32)).reshape(B, POSE_FEAT)
    v_posed = v_shaped + jnp.einsum('bp,vcp->bvc', pf, raw['posedirs'])
    posed_joints, A = batch_rigid_transform(rot_mats, j_rest, MANO_PARENTS)
    T = jnp.einsum('vj,bjrk->bvrk', raw['lbs_weights'], A)
    v_homo = jnp.concatenate([v_posed, jnp.ones((B, NUM_VERTS, 1), jnp.float32)], axis=2)
    verts = jnp.einsum('bvrk,bvk->bvr', T, v_homo)[..., :3]
    wrist = RIGHT_WRIST_BASE_LOC if is_rhand else LEFT_WRIST_BASE_LOC
    offset = transl - (0.0 if no_shift else 1.0) * wrist
    verts = verts + offset[:, None, :]
    joints = posed_joints + offset[:, None, :]
    if return_finger_tips:
        tip_idx = jnp.array(list(HAND_TIP_IDS.values()), dtype=jnp.int32)
        joints = jnp.concatenate([joints, verts[:, tip_idx]], axis=1)
    return verts, joints, full_pose


# ----------------------------------------------------------------------------
# Deterministic synthetic MANO parameters
# ----------------------------------------------------------------------------
def _flat_const(x_lcv):
    """(L, 3, 778) -> (L, 3*V_PAD) with zero lane padding per coordinate slab."""
    return jnp.pad(x_lcv, ((0, 0), (0, 0), (0, V_PAD - NUM_VERTS))).reshape(x_lcv.shape[0], VF)


def make_params(key):
    ks = jax.random.split(key, 7)
    v_template = 0.1 * jax.random.normal(ks[0], (NUM_VERTS, 3), jnp.float32)
    shapedirs = 0.01 * jax.random.normal(ks[1], (NUM_VERTS, 3, NUM_BETAS), jnp.float32)
    posedirs = 0.01 * jax.random.normal(ks[2], (NUM_VERTS, 3, POSE_FEAT), jnp.float32)
    jreg_raw = jnp.abs(jax.random.normal(ks[3], (NUM_JOINTS, NUM_VERTS), jnp.float32))
    J_regressor = jreg_raw / jreg_raw.sum(axis=1, keepdims=True)
    w_raw = jnp.abs(jax.random.normal(ks[4], (NUM_VERTS, NUM_JOINTS), jnp.float32))
    lbs_weights = w_raw / w_raw.sum(axis=1, keepdims=True)
    pose_mean = jnp.concatenate(
        [jnp.zeros((3,), jnp.float32),
         0.1 * jax.random.normal(ks[5], (45,), jnp.float32)])
    faces = jax.random.randint(ks[6], (1538, 3), 0, NUM_VERTS, dtype=jnp.int32)

    raw = dict(v_template=v_template, shapedirs=shapedirs, posedirs=posedirs,
               J_regressor=J_regressor, lbs_weights=lbs_weights,
               pose_mean=pose_mean, faces=faces)

    # Folded rest-pose joint regressor (exact, stays f32).
    J_template = jnp.dot(J_regressor, v_template)                                 # (16, 3)
    J_shapedirs = jnp.einsum('jv,vcl->ljc', J_regressor,
                             shapedirs).reshape(NUM_BETAS, NUM_JOINTS * 3)        # (10, 48)

    # Fused blendshape RHS: rows 0..9 = shapedirs, rows 10..144 = posedirs (bf16).
    sd_flat = _flat_const(jnp.transpose(shapedirs, (2, 1, 0)))                    # (10, 3*Vp)
    pd_flat = _flat_const(jnp.transpose(posedirs, (2, 1, 0)))                     # (135, 3*Vp)
    bsd_flat = jnp.concatenate([sd_flat, pd_flat], axis=0).astype(jnp.bfloat16)   # (145, 3*Vp)

    pallas_params = dict(
        # NOTE: zero padding of lanes 778..895 (and W_t columns) is required so
        # padded vertices come out exactly 0 -- keep when swapping in real weights.
        vt_flat=_flat_const(v_template.T[None])[0:1],                             # (1, 3*Vp) f32
        bsd_flat=bsd_flat,                                                        # (145, 3*Vp) bf16
        W_t=jnp.pad(lbs_weights.T, ((0, 0), (0, V_PAD - NUM_VERTS))),             # (16, Vp) f32
        J_template=J_template,
        J_shapedirs=J_shapedirs,
        pose_mean=pose_mean,
        faces=faces,
    )
    return raw, pallas_params


# ----------------------------------------------------------------------------
# Main
# ----------------------------------------------------------------------------
if __name__ == "__main__":
    key = jax.random.PRNGKey(0)
    kp, ki = jax.random.split(key)
    raw_params, pallas_params = make_params(kp)

    B = 2
    k1, k2, k3, k4 = jax.random.split(ki, 4)
    betas = 0.5 * jax.random.normal(k1, (B, NUM_BETAS), jnp.float32)
    global_orient = 0.2 * jax.random.normal(k2, (B, 3), jnp.float32)
    hand_pose = 0.2 * jax.random.normal(k3, (B, 45), jnp.float32)
    transl = 0.1 * jax.random.normal(k4, (B, 3), jnp.float32)

    input_dict = {'betas': betas, 'global_orient': global_orient,
                  'hand_pose': hand_pose, 'transl': transl,
                  'return_finger_tips': True}

    out = body_model_forward(pallas_params, input_dict, is_rhand=True, mesh_name='right_hand')
    vertices, joints = out['vertices'], out['joints']
    jax.block_until_ready((vertices, joints))

    # Check against pure-JAX f32 reference (kernel uses bf16 blendshape tables,
    # f32 accumulation and f32 transforms -> well within 2e-3).
    v_ref, j_ref, _ = mano_forward_ref(raw_params, betas, global_orient, hand_pose, transl,
                                       is_rhand=True, no_shift=False, return_finger_tips=True)
    np.testing.assert_allclose(np.asarray(vertices), np.asarray(v_ref), rtol=2e-3, atol=2e-3)
    np.testing.assert_allclose(np.asarray(joints), np.asarray(j_ref), rtol=2e-3, atol=2e-3)
    assert vertices.shape == (B, NUM_VERTS, 3) and joints.shape == (B, NUM_JOINTS + 5, 3)

    print("KERNEL_OK")
</pallas_src>

<mosaic_0001>
module attributes {stable_mosaic.version = 11 : i64} {
  func.func @kernel(%arg0: i32, %arg1: memref<8x145xf32, #tpu.memory_space<vmem>>, %arg2: memref<96x16xf32, #tpu.memory_space<vmem>>, %arg3: memref<1x2688xf32, #tpu.memory_space<vmem>>, %arg4: memref<145x2688xbf16, #tpu.memory_space<vmem>>, %arg5: memref<16x896xf32, #tpu.memory_space<vmem>>, %arg6: memref<8x2688xf32, #tpu.memory_space<vmem>>) attributes {dimension_semantics = [#tpu.dimension_semantics<parallel>], iteration_bounds = array<i64: 1>, scalar_prefetch = 0 : i64, scratch_operands = 0 : i64, tpu.core_type = #tpu.core_type<tc>, window_params = [{transform_indices = @transform_0, window_bounds = array<i64: 8, 145>}, {transform_indices = @transform_1, window_bounds = array<i64: 96, 16>}, {pipeline_mode = #tpu.pipeline_mode<synchronous>, transform_indices = @transform_2, window_bounds = array<i64: 1, 2688>}, {pipeline_mode = #tpu.pipeline_mode<synchronous>, transform_indices = @transform_3, window_bounds = array<i64: 145, 2688>}, {pipeline_mode = #tpu.pipeline_mode<synchronous>, transform_indices = @transform_4, window_bounds = array<i64: 16, 896>}, {transform_indices = @transform_5, window_bounds = array<i64: 8, 2688>}]} {
    %c0 = arith.constant 0 : index
    %c0_0 = arith.constant 0 : index
    %0 = vector.load %arg1[%c0, %c0_0] : memref<8x145xf32, #tpu.memory_space<vmem>>, vector<8x145xf32>
    %1 = arith.truncf %0 : vector<8x145xf32> to vector<8x145xbf16>
    %c0_1 = arith.constant 0 : index
    %c0_2 = arith.constant 0 : index
    %2 = vector.load %arg4[%c0_1, %c0_2] : memref<145x2688xbf16, #tpu.memory_space<vmem>>, vector<145x2688xbf16>
    %cst = arith.constant dense<0.000000e+00> : vector<8x2688xf32>
    %3 = tpu.matmul %1, %2, %cst {dimension_numbers = #tpu.dot_dimension_numbers<[1], [0], [0], [1], [0, 0, 1, 1], [], []>} : vector<8x145xbf16>, vector<145x2688xbf16>, vector<8x2688xf32> -> vector<8x2688xf32>
    %c0_3 = arith.constant 0 : index
    %c0_4 = arith.constant 0 : index
    %4 = vector.load %arg3[%c0_3, %c0_4] : memref<1x2688xf32, #tpu.memory_space<vmem>>, vector<1x2688xf32>
    %5 = vector.broadcast %4 : vector<1x2688xf32> to vector<8x2688xf32>
    %6 = arith.addf %5, %3 : vector<8x2688xf32>
    %c0_5 = arith.constant 0 : index
    %c0_6 = arith.constant 0 : index
    %7 = vector.load %arg2[%c0_5, %c0_6] : memref<96x16xf32, #tpu.memory_space<vmem>>, vector<96x16xf32>
    %c0_7 = arith.constant 0 : index
    %c0_8 = arith.constant 0 : index
    %8 = vector.load %arg5[%c0_7, %c0_8] : memref<16x896xf32, #tpu.memory_space<vmem>>, vector<16x896xf32>
    %cst_9 = arith.constant dense<0.000000e+00> : vector<96x896xf32>
    %9 = tpu.matmul %7, %8, %cst_9 {dimension_numbers = #tpu.dot_dimension_numbers<[1], [0], [0], [1], [0, 0, 1, 1], [], []>} : vector<96x16xf32>, vector<16x896xf32>, vector<96x896xf32> -> vector<96x896xf32>
    %10 = vector.extract_strided_slice %9 {offsets = [24, 0], sizes = [8, 896], strides = [1, 1]} : vector<96x896xf32> to vector<8x896xf32>
    %11 = vector.extract_strided_slice %9 {offsets = [0, 0], sizes = [8, 896], strides = [1, 1]} : vector<96x896xf32> to vector<8x896xf32>
    %12 = vector.extract_strided_slice %6 {offsets = [0, 0], sizes = [8, 896], strides = [1, 1]} : vector<8x2688xf32> to vector<8x896xf32>
    %13 = arith.mulf %11, %12 : vector<8x896xf32>
    %14 = arith.addf %10, %13 : vector<8x896xf32>
    %15 = vector.extract_strided_slice %9 {offsets = [8, 0], sizes = [8, 896], strides = [1, 1]} : vector<96x896xf32> to vector<8x896xf32>
    %16 = vector.extract_strided_slice %6 {offsets = [0, 896], sizes = [8, 896], strides = [1, 1]} : vector<8x2688xf32> to vector<8x896xf32>
    %17 = arith.mulf %15, %16 : vector<8x896xf32>
    %18 = arith.addf %14, %17 : vector<8x896xf32>
    %19 = vector.extract_strided_slice %9 {offsets = [16, 0], sizes = [8, 896], strides = [1, 1]} : vector<96x896xf32> to vector<8x896xf32>
    %20 = vector.extract_strided_slice %6 {offsets = [0, 1792], sizes = [8, 896], strides = [1, 1]} : vector<8x2688xf32> to vector<8x896xf32>
    %21 = arith.mulf %19, %20 : vector<8x896xf32>
    %22 = arith.addf %18, %21 : vector<8x896xf32>
    %c0_10 = arith.constant 0 : index
    %c0_11 = arith.constant 0 : index
    %23 = vector.load %arg6[%c0_10, %c0_11] : memref<8x2688xf32, #tpu.memory_space<vmem>>, vector<8x896xf32>
    tpu.vector_store %arg6[%c0_10, %c0_11], %22 {strides = array<i32>} : memref<8x2688xf32, #tpu.memory_space<vmem>>, vector<8x896xf32>,
    %24 = vector.extract_strided_slice %9 {offsets = [56, 0], sizes = [8, 896], strides = [1, 1]} : vector<96x896xf32> to vector<8x896xf32>
    %25 = vector.extract_strided_slice %9 {offsets = [32, 0], sizes = [8, 896], strides = [1, 1]} : vector<96x896xf32> to vector<8x896xf32>
    %26 = vector.extract_strided_slice %6 {offsets = [0, 0], sizes = [8, 896], strides = [1, 1]} : vector<8x2688xf32> to vector<8x896xf32>
    %27 = arith.mulf %25, %26 : vector<8x896xf32>
    %28 = arith.addf %24, %27 : vector<8x896xf32>
    %29 = vector.extract_strided_slice %9 {offsets = [40, 0], sizes = [8, 896], strides = [1, 1]} : vector<96x896xf32> to vector<8x896xf32>
    %30 = vector.extract_strided_slice %6 {offsets = [0, 896], sizes = [8, 896], strides = [1, 1]} : vector<8x2688xf32> to vector<8x896xf32>
    %31 = arith.mulf %29, %30 : vector<8x896xf32>
    %32 = arith.addf %28, %31 : vector<8x896xf32>
    %33 = vector.extract_strided_slice %9 {offsets = [48, 0], sizes = [8, 896], strides = [1, 1]} : vector<96x896xf32> to vector<8x896xf32>
    %34 = vector.extract_strided_slice %6 {offsets = [0, 1792], sizes = [8, 896], strides = [1, 1]} : vector<8x2688xf32> to vector<8x896xf32>
    %35 = arith.mulf %33, %34 : vector<8x896xf32>
    %36 = arith.addf %32, %35 : vector<8x896xf32>
    %c0_12 = arith.constant 0 : index
    %c896 = arith.constant 896 : index
    %37 = vector.load %arg6[%c0_12, %c896] : memref<8x2688xf32, #tpu.memory_space<vmem>>, vector<8x896xf32>
    tpu.vector_store %arg6[%c0_12, %c896], %36 {strides = array<i32>} : memref<8x2688xf32, #tpu.memory_space<vmem>>, vector<8x896xf32>,
    %38 = vector.extract_strided_slice %9 {offsets = [88, 0], sizes = [8, 896], strides = [1, 1]} : vector<96x896xf32> to vector<8x896xf32>
    %39 = vector.extract_strided_slice %9 {offsets = [64, 0], sizes = [8, 896], strides = [1, 1]} : vector<96x896xf32> to vector<8x896xf32>
    %40 = vector.extract_strided_slice %6 {offsets = [0, 0], sizes = [8, 896], strides = [1, 1]} : vector<8x2688xf32> to vector<8x896xf32>
    %41 = arith.mulf %39, %40 : vector<8x896xf32>
    %42 = arith.addf %38, %41 : vector<8x896xf32>
    %43 = vector.extract_strided_slice %9 {offsets = [72, 0], sizes = [8, 896], strides = [1, 1]} : vector<96x896xf32> to vector<8x896xf32>
    %44 = vector.extract_strided_slice %6 {offsets = [0, 896], sizes = [8, 896], strides = [1, 1]} : vector<8x2688xf32> to vector<8x896xf32>
    %45 = arith.mulf %43, %44 : vector<8x896xf32>
    %46 = arith.addf %42, %45 : vector<8x896xf32>
    %47 = vector.extract_strided_slice %9 {offsets = [80, 0], sizes = [8, 896], strides = [1, 1]} : vector<96x896xf32> to vector<8x896xf32>
    %48 = vector.extract_strided_slice %6 {offsets = [0, 1792], sizes = [8, 896], strides = [1, 1]} : vector<8x2688xf32> to vector<8x896xf32>
    %49 = arith.mulf %47, %48 : vector<8x896xf32>
    %50 = arith.addf %46, %49 : vector<8x896xf32>
    %c0_13 = arith.constant 0 : index
    %c1792 = arith.constant 1792 : index
    %51 = vector.load %arg6[%c0_13, %c1792] : memref<8x2688xf32, #tpu.memory_space<vmem>>, vector<8x896xf32>
    tpu.vector_store %arg6[%c0_13, %c1792], %50 {strides = array<i32>} : memref<8x2688xf32, #tpu.memory_space<vmem>>, vector<8x896xf32>,
    return
  }
  func.func @transform_0(%arg0: i32) -> (i32, i32) {
    %c0_i32 = arith.constant 0 : i32
    %c0_i32_0 = arith.constant 0 : i32
    return %arg0, %c0_i32 : i32, i32
  }
  func.func @transform_1(%arg0: i32) -> (i32, i32) {
    %c0_i32 = arith.constant 0 : i32
    %c0_i32_0 = arith.constant 0 : i32
    return %arg0, %c0_i32 : i32, i32
  }
  func.func @transform_2(%arg0: i32) -> (i32, i32) {
    %c0_i32 = arith.constant 0 : i32
    %c0_i32_0 = arith.constant 0 : i32
    %c0_i32_1 = arith.constant 0 : i32
    return %c0_i32, %c0_i32_0 : i32, i32
  }
  func.func @transform_3(%arg0: i32) -> (i32, i32) {
    %c0_i32 = arith.constant 0 : i32
    %c0_i32_0 = arith.constant 0 : i32
    %c0_i32_1 = arith.constant 0 : i32
    return %c0_i32, %c0_i32_0 : i32, i32
  }
  func.func @transform_4(%arg0: i32) -> (i32, i32) {
    %c0_i32 = arith.constant 0 : i32
    %c0_i32_0 = arith.constant 0 : i32
    %c0_i32_1 = arith.constant 0 : i32
    return %c0_i32, %c0_i32_0 : i32, i32
  }
  func.func @transform_5(%arg0: i32) -> (i32, i32) {
    %c0_i32 = arith.constant 0 : i32
    %c0_i32_0 = arith.constant 0 : i32
    return %arg0, %c0_i32 : i32, i32
  }
}

</mosaic_0001>

<llo_original>
// kernel: tpu_custom_call.1
$region0: #{tpu_custom_call.1}
  #allocation0 [shape = 'u32[]', space=smem, size = 0x4, offset = 0x4, fixed_abs, tag = 'smem constant byte address 0x4 - core index']
  #allocation1 [shape = 'u32[144,128]{1,0:T(1,128)}', space=vmem, size = 0x12000, scoped, tag = 'internal scratch']
  %s0 = inlined_call_operand.hbm [shape: f32[8,145], index: 0, kind: input, shape index: {}]
  %s1 = inlined_call_operand.vmem [shape: f32[96,16], index: 1, kind: input, shape index: {}]
  %s2 = inlined_call_operand.hbm [shape: f32[1,2688], index: 2, kind: input, shape index: {}]
  %s3 = inlined_call_operand.hbm [shape: bf16[145,2688], index: 3, kind: input, shape index: {}]
  %s4 = inlined_call_operand.vmem [shape: f32[16,896], index: 4, kind: input, shape index: {}]
  %s5 = inlined_call_operand.hbm [shape: f32[8,2688], index: 5, kind: output, shape index: {}]
  %s6 = sld [smem:[#allocation0]]
  $region42: #{tpu_custom_call.1} parent=0
    _
  %s8 = ssub.s32 1, %s6
  %s9 = scalar_select 0, %s8, %s6
  $region1: #{tpu_custom_call.1} parent=0
    #allocation2 [shape = 'u8[8192]{0}', space=vmem, size = 0x2000, scoped, tag = 'input window, operand 0, single buffered']
    #allocation3 [shape = 's32[1]{0}', space=sflag, size = 0x4, scoped, tag = 'scoped memory for tpu_custom_call.1']
    #allocation4 [shape = 's32[1]{0}', space=sflag, size = 0x4, scoped, tag = 'scoped memory for tpu_custom_call.1']
    #allocation5 [shape = 'u8[10752]{0}', space=vmem, size = 0x2c00, scoped, tag = 'input window, operand 2, single buffered']
    #allocation6 [shape = 's32[1]{0}', space=sflag, size = 0x4, scoped, tag = 'scoped memory for tpu_custom_call.1']
    #allocation7 [shape = 'u8[817152]{0}', space=vmem, size = 0xc7800, scoped, tag = 'input window, operand 3, single buffered']
    #allocation8 [shape = 'u8[86016]{0}', space=vmem, size = 0x15000, scoped, tag = 'output window, operand 0, single buffered']
    %10 = vsyncpa [#allocation3], 0
    %11 = vsyncpa [#allocation6], 0
    %12 = vsyncpa [#allocation4], 0
    // Predicated region
    $region2: #{tpu_custom_call.1} parent=1 // pred_check
      _
    $region3: #{tpu_custom_call.1} parent=1 // pred_check_branch
      %14 = sbr.rel (0) target = $region5
    $region4: #{tpu_custom_call.1} parent=1 // pred_region
      %s16 = ssub.s32 256, 256
      %17 = vsyncadd [#allocation3], %s16
      %s19 = sshll.u32 [#allocation2], 4
      %s20 = int_to_ptr.vmem [resolvable:$true] %s19
      %22 = dma.hbm_to_vmem [thread:$0]  %s0, 256, %s20, [#allocation3]
    $region5: #{tpu_custom_call.1} parent=1 // pred_fallthru
      _
    // Predicated region
    $region6: #{tpu_custom_call.1} parent=1 // pred_check
      _
    $region7: #{tpu_custom_call.1} parent=1 // pred_check_branch
      %24 = sbr.rel (0) target = $region9
    $region8: #{tpu_custom_call.1} parent=1 // pred_region
      _
    $region9: #{tpu_custom_call.1} parent=1 // pred_fallthru
      _
    // Predicated region
    $region10: #{tpu_custom_call.1} parent=1 // pred_check
      _
    $region11: #{tpu_custom_call.1} parent=1 // pred_check_branch
      %26 = sbr.rel (0) target = $region13
    $region12: #{tpu_custom_call.1} parent=1 // pred_region
      %s28 = ssub.s32 336, 336
      %29 = vsyncadd [#allocation6], %s28
      %s31 = sshll.u32 [#allocation5], 4
      %s32 = int_to_ptr.vmem [resolvable:$true] %s31
      %34 = dma.hbm_to_vmem [thread:$0]  %s2, 336, %s32, [#allocation6]
    $region13: #{tpu_custom_call.1} parent=1 // pred_fallthru
      _
    // Predicated region
    $region14: #{tpu_custom_call.1} parent=1 // pred_check
      _
    $region15: #{tpu_custom_call.1} parent=1 // pred_check_branch
      %36 = sbr.rel (0) target = $region17
    $region16: #{tpu_custom_call.1} parent=1 // pred_region
      %s38 = ssub.s32 25536, 25536
      %39 = vsyncadd [#allocation6], %s38
      %s40 = sshll.u32 [#allocation7], 4
      %s41 = int_to_ptr.vmem [resolvable:$true] %s40
      %46 = dma.hbm_to_vmem [thread:$0]  %s3, 25536, %s41, [#allocation6], 1344, 1344, 84
    $region17: #{tpu_custom_call.1} parent=1 // pred_fallthru
      _
    // Predicated region
    $region18: #{tpu_custom_call.1} parent=1 // pred_check
      _
    $region19: #{tpu_custom_call.1} parent=1 // pred_check_branch
      %48 = sbr.rel (0) target = $region21
    $region20: #{tpu_custom_call.1} parent=1 // pred_region
      _
    $region21: #{tpu_custom_call.1} parent=1 // pred_fallthru
      _
    // Predicated region
    $region22: #{tpu_custom_call.1} parent=1 // pred_check
      _
    $region23: #{tpu_custom_call.1} parent=1 // pred_check_branch
      %50 = sbr.rel (0) target = $region25
    $region24: #{tpu_custom_call.1} parent=1 // pred_region
      %51 = dma.done [#allocation3], 256
    $region25: #{tpu_custom_call.1} parent=1 // pred_fallthru
      _
    // Predicated region
    $region26: #{tpu_custom_call.1} parent=1 // pred_check
      _
    $region27: #{tpu_custom_call.1} parent=1 // pred_check_branch
      %53 = sbr.rel (0) target = $region29
    $region28: #{tpu_custom_call.1} parent=1 // pred_region
      %54 = dma.done [#allocation6], 336
    $region29: #{tpu_custom_call.1} parent=1 // pred_fallthru
      _
    // Predicated region
    $region30: #{tpu_custom_call.1} parent=1 // pred_check
      _
    $region31: #{tpu_custom_call.1} parent=1 // pred_check_branch
      %56 = sbr.rel (0) target = $region33
    $region32: #{tpu_custom_call.1} parent=1 // pred_region
      %57 = dma.done [#allocation6], 25536
    $region33: #{tpu_custom_call.1} parent=1 // pred_fallthru
      _
    %v59 = vld [vmem:[#allocation2] sm:$0xff]
    %v60 = vld [vmem:[#allocation2 + $0x8] sm:$0xff]
    %v61 = vpack.c.bf16 %v59, %v59
    %v62 = vpack.c.bf16 %v60, %v60
    %v63 = vld [vmem:[#allocation7] sm:$0xff]
    %v64 = vld [vmem:[#allocation7 + $0x8] sm:$0xff]
    %v65 = vld [vmem:[#allocation7 + $0x10] sm:$0xff]
    %v66 = vld [vmem:[#allocation7 + $0x18] sm:$0xff]
    %v67 = vld [vmem:[#allocation7 + $0x20] sm:$0xff]
    %v68 = vld [vmem:[#allocation7 + $0x28] sm:$0xff]
    %v69 = vld [vmem:[#allocation7 + $0x30] sm:$0xff]
    %v70 = vld [vmem:[#allocation7 + $0x38] sm:$0xff]
    %v71 = vld [vmem:[#allocation7 + $0x40] sm:$0xff]
    %v72 = vld [vmem:[#allocation7 + $0x48] sm:$0xff]
    %v73 = vld [vmem:[#allocation7 + $0x50] sm:$0xf]
    %v74 = vld [vmem:[#allocation7 + $0x54] sm:$0xff]
    %v75 = vld [vmem:[#allocation7 + $0x5c] sm:$0xff]
    %v76 = vld [vmem:[#allocation7 + $0x64] sm:$0xff]
    %v77 = vld [vmem:[#allocation7 + $0x6c] sm:$0xff]
    %v78 = vld [vmem:[#allocation7 + $0x74] sm:$0xff]
    %v79 = vld [vmem:[#allocation7 + $0x7c] sm:$0xff]
    %v80 = vld [vmem:[#allocation7 + $0x84] sm:$0xff]
    %v81 = vld [vmem:[#allocation7 + $0x8c] sm:$0xff]
    %v82 = vld [vmem:[#allocation7 + $0x94] sm:$0xff]
    %v83 = vld [vmem:[#allocation7 + $0x9c] sm:$0xff]
    %v84 = vld [vmem:[#allocation7 + $0xa4] sm:$0xf]
    %v85 = vld [vmem:[#allocation7 + $0xa8] sm:$0xff]
    %v86 = vld [vmem:[#allocation7 + $0xb0] sm:$0xff]
    %v87 = vld [vmem:[#allocation7 + $0xb8] sm:$0xff]
    %v88 = vld [vmem:[#allocation7 + $0xc0] sm:$0xff]
    %v89 = vld [vmem:[#allocation7 + $0xc8] sm:$0xff]
    %v90 = vld [vmem:[#allocation7 + $0xd0] sm:$0xff]
    %v91 = vld [vmem:[#allocation7 + $0xd8] sm:$0xff]
    %v92 = vld [vmem:[#allocation7 + $0xe0] sm:$0xff]
    %v93 = vld [vmem:[#allocation7 + $0xe8] sm:$0xff]
    %v94 = vld [vmem:[#allocation7 + $0xf0] sm:$0xff]
    %v95 = vld [vmem:[#allocation7 + $0xf8] sm:$0xf]
    %v96 = vld [vmem:[#allocation7 + $0xfc] sm:$0xff]
    %v97 = vld [vmem:[#allocation7 + $0x104] sm:$0xff]
    %v98 = vld [vmem:[#allocation7 + $0x10c] sm:$0xff]
    %v99 = vld [vmem:[#allocation7 + $0x114] sm:$0xff]
    %v100 = vld [vmem:[#allocation7 + $0x11c] sm:$0xff]
    %v101 = vld [vmem:[#allocation7 + $0x124] sm:$0xff]
    %v102 = vld [vmem:[#allocation7 + $0x12c] sm:$0xff]
    %v103 = vld [vmem:[#allocation7 + $0x134] sm:$0xff]
    %v104 = vld [vmem:[#allocation7 + $0x13c] sm:$0xff]
    %v105 = vld [vmem:[#allocation7 + $0x144] sm:$0xff]
    %v106 = vld [vmem:[#allocation7 + $0x14c] sm:$0xf]
    %v107 = vld [vmem:[#allocation7 + $0x150] sm:$0xff]
    %v108 = vld [vmem:[#allocation7 + $0x158] sm:$0xff]
    %v109 = vld [vmem:[#allocation7 + $0x160] sm:$0xff]
    %v110 = vld [vmem:[#allocation7 + $0x168] sm:$0xff]
    %v111 = vld [vmem:[#allocation7 + $0x170] sm:$0xff]
    %v112 = vld [vmem:[#allocation7 + $0x178] sm:$0xff]
    %v113 = vld [vmem:[#allocation7 + $0x180] sm:$0xff]
    %v114 = vld [vmem:[#allocation7 + $0x188] sm:$0xff]
    %v115 = vld [vmem:[#allocation7 + $0x190] sm:$0xff]
    %v116 = vld [vmem:[#allocation7 + $0x198] sm:$0xff]
    %v117 = vld [vmem:[#allocation7 + $0x1a0] sm:$0xf]
    %v118 = vld [vmem:[#allocation7 + $0x1a4] sm:$0xff]
    %v119 = vld [vmem:[#allocation7 + $0x1ac] sm:$0xff]
    %v120 = vld [vmem:[#allocation7 + $0x1b4] sm:$0xff]
    %v121 = vld [vmem:[#allocation7 + $0x1bc] sm:$0xff]
    %v122 = vld [vmem:[#allocation7 + $0x1c4] sm:$0xff]
    %v123 = vld [vmem:[#allocation7 + $0x1cc] sm:$0xff]
    %v124 = vld [vmem:[#allocation7 + $0x1d4] sm:$0xff]
    %v125 = vld [vmem:[#allocation7 + $0x1dc] sm:$0xff]
    %v126 = vld [vmem:[#allocation7 + $0x1e4] sm:$0xff]
    %v127 = vld [vmem:[#allocation7 + $0x1ec] sm:$0xff]
    %v128 = vld [vmem:[#allocation7 + $0x1f4] sm:$0xf]
    %v129 = vld [vmem:[#allocation7 + $0x1f8] sm:$0xff]
    %v130 = vld [vmem:[#allocation7 + $0x200] sm:$0xff]
    %v131 = vld [vmem:[#allocation7 + $0x208] sm:$0xff]
    %v132 = vld [vmem:[#allocation7 + $0x210] sm:$0xff]
    %v133 = vld [vmem:[#allocation7 + $0x218] sm:$0xff]
    %v134 = vld [vmem:[#allocation7 + $0x220] sm:$0xff]
    %v135 = vld [vmem:[#allocation7 + $0x228] sm:$0xff]
    %v136 = vld [vmem:[#allocation7 + $0x230] sm:$0xff]
    %v137 = vld [vmem:[#allocation7 + $0x238] sm:$0xff]
    %v138 = vld [vmem:[#allocation7 + $0x240] sm:$0xff]
    %v139 = vld [vmem:[#allocation7 + $0x248] sm:$0xf]
    %v140 = vld [vmem:[#allocation7 + $0x24c] sm:$0xff]
    %v141 = vld [vmem:[#allocation7 + $0x254] sm:$0xff]
    %v142 = vld [vmem:[#allocation7 + $0x25c] sm:$0xff]
    %v143 = vld [vmem:[#allocation7 + $0x264] sm:$0xff]
    %v144 = vld [vmem:[#allocation7 + $0x26c] sm:$0xff]
    %v145 = vld [vmem:[#allocation7 + $0x274] sm:$0xff]
    %v146 = vld [vmem:[#allocation7 + $0x27c] sm:$0xff]
    %v147 = vld [vmem:[#allocation7 + $0x284] sm:$0xff]
    %v148 = vld [vmem:[#allocation7 + $0x28c] sm:$0xff]
    %v149 = vld [vmem:[#allocation7 + $0x294] sm:$0xff]
    %v150 = vld [vmem:[#allocation7 + $0x29c] sm:$0xf]
    %v151 = vld [vmem:[#allocation7 + $0x2a0] sm:$0xff]
    %v152 = vld [vmem:[#allocation7 + $0x2a8] sm:$0xff]
    %v153 = vld [vmem:[#allocation7 + $0x2b0] sm:$0xff]
    %v154 = vld [vmem:[#allocation7 + $0x2b8] sm:$0xff]
    %v155 = vld [vmem:[#allocation7 + $0x2c0] sm:$0xff]
    %v156 = vld [vmem:[#allocation7 + $0x2c8] sm:$0xff]
    %v157 = vld [vmem:[#allocation7 + $0x2d0] sm:$0xff]
    %v158 = vld [vmem:[#allocation7 + $0x2d8] sm:$0xff]
    %v159 = vld [vmem:[#allocation7 + $0x2e0] sm:$0xff]
    %v160 = vld [vmem:[#allocation7 + $0x2e8] sm:$0xff]
    %v161 = vld [vmem:[#allocation7 + $0x2f0] sm:$0xf]
    %v162 = vld [vmem:[#allocation7 + $0x2f4] sm:$0xff]
    %v163 = vld [vmem:[#allocation7 + $0x2fc] sm:$0xff]
    %v164 = vld [vmem:[#allocation7 + $0x304] sm:$0xff]
    %v165 = vld [vmem:[#allocation7 + $0x30c] sm:$0xff]
    %v166 = vld [vmem:[#allocation7 + $0x314] sm:$0xff]
    %v167 = vld [vmem:[#allocation7 + $0x31c] sm:$0xff]
    %v168 = vld [vmem:[#allocation7 + $0x324] sm:$0xff]
    %v169 = vld [vmem:[#allocation7 + $0x32c] sm:$0xff]
    %v170 = vld [vmem:[#allocation7 + $0x334] sm:$0xff]
    %v171 = vld [vmem:[#allocation7 + $0x33c] sm:$0xff]
    %v172 = vld [vmem:[#allocation7 + $0x344] sm:$0xf]
    %v173 = vld [vmem:[#allocation7 + $0x348] sm:$0xff]
    %v174 = vld [vmem:[#allocation7 + $0x350] sm:$0xff]
    %v175 = vld [vmem:[#allocation7 + $0x358] sm:$0xff]
    %v176 = vld [vmem:[#allocation7 + $0x360] sm:$0xff]
    %v177 = vld [vmem:[#allocation7 + $0x368] sm:$0xff]
    %v178 = vld [vmem:[#allocation7 + $0x370] sm:$0xff]
    %v179 = vld [vmem:[#allocation7 + $0x378] sm:$0xff]
    %v180 = vld [vmem:[#allocation7 + $0x380] sm:$0xff]
    %v181 = vld [vmem:[#allocation7 + $0x388] sm:$0xff]
    %v182 = vld [vmem:[#allocation7 + $0x390] sm:$0xff]
    %v183 = vld [vmem:[#allocation7 + $0x398] sm:$0xf]
    %v184 = vld [vmem:[#allocation7 + $0x39c] sm:$0xff]
    %v185 = vld [vmem:[#allocation7 + $0x3a4] sm:$0xff]
    %v186 = vld [vmem:[#allocation7 + $0x3ac] sm:$0xff]
    %v187 = vld [vmem:[#allocation7 + $0x3b4] sm:$0xff]
    %v188 = vld [vmem:[#allocation7 + $0x3bc] sm:$0xff]
    %v189 = vld [vmem:[#allocation7 + $0x3c4] sm:$0xff]
    %v190 = vld [vmem:[#allocation7 + $0x3cc] sm:$0xff]
    %v191 = vld [vmem:[#allocation7 + $0x3d4] sm:$0xff]
    %v192 = vld [vmem:[#allocation7 + $0x3dc] sm:$0xff]
    %v193 = vld [vmem:[#allocation7 + $0x3e4] sm:$0xff]
    %v194 = vld [vmem:[#allocation7 + $0x3ec] sm:$0xf]
    %v195 = vld [vmem:[#allocation7 + $0x3f0] sm:$0xff]
    %v196 = vld [vmem:[#allocation7 + $0x3f8] sm:$0xff]
    %v197 = vld [vmem:[#allocation7 + $0x400] sm:$0xff]
    %v198 = vld [vmem:[#allocation7 + $0x408] sm:$0xff]
    %v199 = vld [vmem:[#allocation7 + $0x410] sm:$0xff]
    %v200 = vld [vmem:[#allocation7 + $0x418] sm:$0xff]
    %v201 = vld [vmem:[#allocation7 + $0x420] sm:$0xff]
    %v202 = vld [vmem:[#allocation7 + $0x428] sm:$0xff]
    %v203 = vld [vmem:[#allocation7 + $0x430] sm:$0xff]
    %v204 = vld [vmem:[#allocation7 + $0x438] sm:$0xff]
    %v205 = vld [vmem:[#allocation7 + $0x440] sm:$0xf]
    %v206 = vld [vmem:[#allocation7 + $0x444] sm:$0xff]
    %v207 = vld [vmem:[#allocation7 + $0x44c] sm:$0xff]
    %v208 = vld [vmem:[#allocation7 + $0x454] sm:$0xff]
    %v209 = vld [vmem:[#allocation7 + $0x45c] sm:$0xff]
    %v210 = vld [vmem:[#allocation7 + $0x464] sm:$0xff]
    %v211 = vld [vmem:[#allocation7 + $0x46c] sm:$0xff]
    %v212 = vld [vmem:[#allocation7 + $0x474] sm:$0xff]
    %v213 = vld [vmem:[#allocation7 + $0x47c] sm:$0xff]
    %v214 = vld [vmem:[#allocation7 + $0x484] sm:$0xff]
    %v215 = vld [vmem:[#allocation7 + $0x48c] sm:$0xff]
    %v216 = vld [vmem:[#allocation7 + $0x494] sm:$0xf]
    %v217 = vld [vmem:[#allocation7 + $0x498] sm:$0xff]
    %v218 = vld [vmem:[#allocation7 + $0x4a0] sm:$0xff]
    %v219 = vld [vmem:[#allocation7 + $0x4a8] sm:$0xff]
    %v220 = vld [vmem:[#allocation7 + $0x4b0] sm:$0xff]
    %v221 = vld [vmem:[#allocation7 + $0x4b8] sm:$0xff]
    %v222 = vld [vmem:[#allocation7 + $0x4c0] sm:$0xff]
    %v223 = vld [vmem:[#allocation7 + $0x4c8] sm:$0xff]
    %v224 = vld [vmem:[#allocation7 + $0x4d0] sm:$0xff]
    %v225 = vld [vmem:[#allocation7 + $0x4d8] sm:$0xff]
    %v226 = vld [vmem:[#allocation7 + $0x4e0] sm:$0xff]
    %v227 = vld [vmem:[#allocation7 + $0x4e8] sm:$0xf]
    %v228 = vld [vmem:[#allocation7 + $0x4ec] sm:$0xff]
    %v229 = vld [vmem:[#allocation7 + $0x4f4] sm:$0xff]
    %v230 = vld [vmem:[#allocation7 + $0x4fc] sm:$0xff]
    %v231 = vld [vmem:[#allocation7 + $0x504] sm:$0xff]
    %v232 = vld [vmem:[#allocation7 + $0x50c] sm:$0xff]
    %v233 = vld [vmem:[#allocation7 + $0x514] sm:$0xff]
    %v234 = vld [vmem:[#allocation7 + $0x51c] sm:$0xff]
    %v235 = vld [vmem:[#allocation7 + $0x524] sm:$0xff]
    %v236 = vld [vmem:[#allocation7 + $0x52c] sm:$0xff]
    %v237 = vld [vmem:[#allocation7 + $0x534] sm:$0xff]
    %v238 = vld [vmem:[#allocation7 + $0x53c] sm:$0xf]
    %v239 = vld [vmem:[#allocation7 + $0x540] sm:$0xff]
    %v240 = vld [vmem:[#allocation7 + $0x548] sm:$0xff]
    %v241 = vld [vmem:[#allocation7 + $0x550] sm:$0xff]
    %v242 = vld [vmem:[#allocation7 + $0x558] sm:$0xff]
    %v243 = vld [vmem:[#allocation7 + $0x560] sm:$0xff]
    %v244 = vld [vmem:[#allocation7 + $0x568] sm:$0xff]
    %v245 = vld [vmem:[#allocation7 + $0x570] sm:$0xff]
    %v246 = vld [vmem:[#allocation7 + $0x578] sm:$0xff]
    %v247 = vld [vmem:[#allocation7 + $0x580] sm:$0xff]
    %v248 = vld [vmem:[#allocation7 + $0x588] sm:$0xff]
    %v249 = vld [vmem:[#allocation7 + $0x590] sm:$0xf]
    %v250 = vld [vmem:[#allocation7 + $0x594] sm:$0xff]
    %v251 = vld [vmem:[#allocation7 + $0x59c] sm:$0xff]
    %v252 = vld [vmem:[#allocation7 + $0x5a4] sm:$0xff]
    %v253 = vld [vmem:[#allocation7 + $0x5ac] sm:$0xff]
    %v254 = vld [vmem:[#allocation7 + $0x5b4] sm:$0xff]
    %v255 = vld [vmem:[#allocation7 + $0x5bc] sm:$0xff]
    %v256 = vld [vmem:[#allocation7 + $0x5c4] sm:$0xff]
    %v257 = vld [vmem:[#allocation7 + $0x5cc] sm:$0xff]
    %v258 = vld [vmem:[#allocation7 + $0x5d4] sm:$0xff]
    %v259 = vld [vmem:[#allocation7 + $0x5dc] sm:$0xff]
    %v260 = vld [vmem:[#allocation7 + $0x5e4] sm:$0xf]
    %v261 = vld [vmem:[#allocation7 + $0x5e8] sm:$0x11]
    %v262 = vld [vmem:[#allocation7 + $0x5f0] sm:$0x11]
    %v263 = vld [vmem:[#allocation7 + $0x5f8] sm:$0x11]
    %v264 = vld [vmem:[#allocation7 + $0x600] sm:$0x11]
    %v265 = vld [vmem:[#allocation7 + $0x608] sm:$0x11]
    %v266 = vld [vmem:[#allocation7 + $0x610] sm:$0x11]
    %v267 = vld [vmem:[#allocation7 + $0x618] sm:$0x11]
    %v268 = vld [vmem:[#allocation7 + $0x620] sm:$0x11]
    %v269 = vld [vmem:[#allocation7 + $0x628] sm:$0x11]
    %v270 = vld [vmem:[#allocation7 + $0x630] sm:$0x11]
    %v271 = vld [vmem:[#allocation7 + $0x638] sm:$0x1]
    %v481 = vunpack.c.l.b16 %v63
    %v482 = vunpack.c.h.b16 %v63
    %v483 = vunpack.c.l.b16 %v64
    %v484 = vunpack.c.h.b16 %v64
    %v485 = vunpack.c.l.b16 %v65
    %v486 = vunpack.c.h.b16 %v65
    %v487 = vunpack.c.l.b16 %v66
    %v488 = vunpack.c.h.b16 %v66
    %v489 = vunpack.c.l.b16 %v67
    %v490 = vunpack.c.h.b16 %v67
    %v491 = vunpack.c.l.b16 %v68
    %v492 = vunpack.c.h.b16 %v68
    %v493 = vunpack.c.l.b16 %v69
    %v494 = vunpack.c.h.b16 %v69
    %v495 = vunpack.c.l.b16 %v70
    %v496 = vunpack.c.h.b16 %v70
    %v497 = vunpack.c.l.b16 %v71
    %v498 = vunpack.c.h.b16 %v71
    %v499 = vunpack.c.l.b16 %v72
    %v500 = vunpack.c.h.b16 %v72
    %v501 = vunpack.c.l.b16 %v73
    %v502 = vunpack.c.l.b16 %v74
    %v503 = vunpack.c.h.b16 %v74
    %v504 = vunpack.c.l.b16 %v75
    %v505 = vunpack.c.h.b16 %v75
    %v506 = vunpack.c.l.b16 %v76
    %v507 = vunpack.c.h.b16 %v76
    %v508 = vunpack.c.l.b16 %v77
    %v509 = vunpack.c.h.b16 %v77
    %v510 = vunpack.c.l.b16 %v78
    %v511 = vunpack.c.h.b16 %v78
    %v512 = vunpack.c.l.b16 %v79
    %v513 = vunpack.c.h.b16 %v79
    %v514 = vunpack.c.l.b16 %v80
    %v515 = vunpack.c.h.b16 %v80
    %v516 = vunpack.c.l.b16 %v81
    %v517 = vunpack.c.h.b16 %v81
    %v518 = vunpack.c.l.b16 %v82
    %v519 = vunpack.c.h.b16 %v82
    %v520 = vunpack.c.l.b16 %v83
    %v521 = vunpack.c.h.b16 %v83
    %v522 = vunpack.c.l.b16 %v84
    %v523 = vunpack.c.l.b16 %v85
    %v524 = vunpack.c.h.b16 %v85
    %v525 = vunpack.c.l.b16 %v86
    %v526 = vunpack.c.h.b16 %v86
    %v527 = vunpack.c.l.b16 %v87
    %v528 = vunpack.c.h.b16 %v87
    %v529 = vunpack.c.l.b16 %v88
    %v530 = vunpack.c.h.b16 %v88
    %v531 = vunpack.c.l.b16 %v89
    %v532 = vunpack.c.h.b16 %v89
    %v533 = vunpack.c.l.b16 %v90
    %v534 = vunpack.c.h.b16 %v90
    %v535 = vunpack.c.l.b16 %v91
    %v536 = vunpack.c.h.b16 %v91
    %v537 = vunpack.c.l.b16 %v92
    %v538 = vunpack.c.h.b16 %v92
    %v539 = vunpack.c.l.b16 %v93
    %v540 = vunpack.c.h.b16 %v93
    %v541 = vunpack.c.l.b16 %v94
    %v542 = vunpack.c.h.b16 %v94
    %v543 = vunpack.c.l.b16 %v95
    %v544 = vunpack.c.l.b16 %v96
    %v545 = vunpack.c.h.b16 %v96
    %v546 = vunpack.c.l.b16 %v97
    %v547 = vunpack.c.h.b16 %v97
    %v548 = vunpack.c.l.b16 %v98
    %v549 = vunpack.c.h.b16 %v98
    %v550 = vunpack.c.l.b16 %v99
    %v551 = vunpack.c.h.b16 %v99
    %v552 = vunpack.c.l.b16 %v100
    %v553 = vunpack.c.h.b16 %v100
    %v554 = vunpack.c.l.b16 %v101
    %v555 = vunpack.c.h.b16 %v101
    %v556 = vunpack.c.l.b16 %v102
    %v557 = vunpack.c.h.b16 %v102
    %v558 = vunpack.c.l.b16 %v103
    %v559 = vunpack.c.h.b16 %v103
    %v560 = vunpack.c.l.b16 %v104
    %v561 = vunpack.c.h.b16 %v104
    %v562 = vunpack.c.l.b16 %v105
    %v563 = vunpack.c.h.b16 %v105
    %v564 = vunpack.c.l.b16 %v106
    %v565 = vunpack.c.l.b16 %v107
    %v566 = vunpack.c.h.b16 %v107
    %v567 = vunpack.c.l.b16 %v108
    %v568 = vunpack.c.h.b16 %v108
    %v569 = vunpack.c.l.b16 %v109
    %v570 = vunpack.c.h.b16 %v109
    %v571 = vunpack.c.l.b16 %v110
    %v572 = vunpack.c.h.b16 %v110
    %v573 = vunpack.c.l.b16 %v111
    %v574 = vunpack.c.h.b16 %v111
    %v575 = vunpack.c.l.b16 %v112
    %v576 = vunpack.c.h.b16 %v112
    %v577 = vunpack.c.l.b16 %v113
    %v578 = vunpack.c.h.b16 %v113
    %v579 = vunpack.c.l.b16 %v114
    %v580 = vunpack.c.h.b16 %v114
    %v581 = vunpack.c.l.b16 %v115
    %v582 = vunpack.c.h.b16 %v115
    %v583 = vunpack.c.l.b16 %v116
    %v584 = vunpack.c.h.b16 %v116
    %v585 = vunpack.c.l.b16 %v117
    %v586 = vunpack.c.l.b16 %v118
    %v587 = vunpack.c.h.b16 %v118
    %v588 = vunpack.c.l.b16 %v119
    %v589 = vunpack.c.h.b16 %v119
    %v590 = vunpack.c.l.b16 %v120
    %v591 = vunpack.c.h.b16 %v120
    %v592 = vunpack.c.l.b16 %v121
    %v593 = vunpack.c.h.b16 %v121
    %v594 = vunpack.c.l.b16 %v122
    %v595 = vunpack.c.h.b16 %v122
    %v596 = vunpack.c.l.b16 %v123
    %v597 = vunpack.c.h.b16 %v123
    %v598 = vunpack.c.l.b16 %v124
    %v599 = vunpack.c.h.b16 %v124
    %v600 = vunpack.c.l.b16 %v125
    %v601 = vunpack.c.h.b16 %v125
    %v602 = vunpack.c.l.b16 %v126
    %v603 = vunpack.c.h.b16 %v126
    %v604 = vunpack.c.l.b16 %v127
    %v605 = vunpack.c.h.b16 %v127
    %v606 = vunpack.c.l.b16 %v128
    %v607 = vunpack.c.l.b16 %v129
    %v608 = vunpack.c.h.b16 %v129
    %v609 = vunpack.c.l.b16 %v130
    %v610 = vunpack.c.h.b16 %v130
    %v611 = vunpack.c.l.b16 %v131
    %v612 = vunpack.c.h.b16 %v131
    %v613 = vunpack.c.l.b16 %v132
    %v614 = vunpack.c.h.b16 %v132
    %v615 = vunpack.c.l.b16 %v133
    %v616 = vunpack.c.h.b16 %v133
    %v617 = vunpack.c.l.b16 %v134
    %v618 = vunpack.c.h.b16 %v134
    %v619 = vunpack.c.l.b16 %v135
    %v620 = vunpack.c.h.b16 %v135
    %v621 = vunpack.c.l.b16 %v136
    %v622 = vunpack.c.h.b16 %v136
    %v623 = vunpack.c.l.b16 %v137
    %v624 = vunpack.c.h.b16 %v137
    %v625 = vunpack.c.l.b16 %v138
    %v626 = vunpack.c.h.b16 %v138
    %v627 = vunpack.c.l.b16 %v139
    %v628 = vunpack.c.l.b16 %v140
    %v629 = vunpack.c.h.b16 %v140
    %v630 = vunpack.c.l.b16 %v141
    %v631 = vunpack.c.h.b16 %v141
    %v632 = vunpack.c.l.b16 %v142
    %v633 = vunpack.c.h.b16 %v142
    %v634 = vunpack.c.l.b16 %v143
    %v635 = vunpack.c.h.b16 %v143
    %v636 = vunpack.c.l.b16 %v144
    %v637 = vunpack.c.h.b16 %v144
    %v638 = vunpack.c.l.b16 %v145
    %v639 = vunpack.c.h.b16 %v145
    %v640 = vunpack.c.l.b16 %v146
    %v641 = vunpack.c.h.b16 %v146
    %v642 = vunpack.c.l.b16 %v147
    %v643 = vunpack.c.h.b16 %v147
    %v644 = vunpack.c.l.b16 %v148
    %v645 = vunpack.c.h.b16 %v148
    %v646 = vunpack.c.l.b16 %v149
    %v647 = vunpack.c.h.b16 %v149
    %v648 = vunpack.c.l.b16 %v150
    %v649 = vunpack.c.l.b16 %v151
    %v650 = vunpack.c.h.b16 %v151
    %v651 = vunpack.c.l.b16 %v152
    %v652 = vunpack.c.h.b16 %v152
    %v653 = vunpack.c.l.b16 %v153
    %v654 = vunpack.c.h.b16 %v153
    %v655 = vunpack.c.l.b16 %v154
    %v656 = vunpack.c.h.b16 %v154
    %v657 = vunpack.c.l.b16 %v155
    %v658 = vunpack.c.h.b16 %v155
    %v659 = vunpack.c.l.b16 %v156
    %v660 = vunpack.c.h.b16 %v156
    %v661 = vunpack.c.l.b16 %v157
    %v662 = vunpack.c.h.b16 %v157
    %v663 = vunpack.c.l.b16 %v158
    %v664 = vunpack.c.h.b16 %v158
    %v665 = vunpack.c.l.b16 %v159
    %v666 = vunpack.c.h.b16 %v159
    %v667 = vunpack.c.l.b16 %v160
    %v668 = vunpack.c.h.b16 %v160
    %v669 = vunpack.c.l.b16 %v161
    %v670 = vunpack.c.l.b16 %v162
    %v671 = vunpack.c.h.b16 %v162
    %v672 = vunpack.c.l.b16 %v163
    %v673 = vunpack.c.h.b16 %v163
    %v674 = vunpack.c.l.b16 %v164
    %v675 = vunpack.c.h.b16 %v164
    %v676 = vunpack.c.l.b16 %v165
    %v677 = vunpack.c.h.b16 %v165
    %v678 = vunpack.c.l.b16 %v166
    %v679 = vunpack.c.h.b16 %v166
    %v680 = vunpack.c.l.b16 %v167
    %v681 = vunpack.c.h.b16 %v167
    %v682 = vunpack.c.l.b16 %v168
    %v683 = vunpack.c.h.b16 %v168
    %v684 = vunpack.c.l.b16 %v169
    %v685 = vunpack.c.h.b16 %v169
    %v686 = vunpack.c.l.b16 %v170
    %v687 = vunpack.c.h.b16 %v170
    %v688 = vunpack.c.l.b16 %v171
    %v689 = vunpack.c.h.b16 %v171
    %v690 = vunpack.c.l.b16 %v172
    %v691 = vunpack.c.l.b16 %v173
    %v692 = vunpack.c.h.b16 %v173
    %v693 = vunpack.c.l.b16 %v174
    %v694 = vunpack.c.h.b16 %v174
    %v695 = vunpack.c.l.b16 %v175
    %v696 = vunpack.c.h.b16 %v175
    %v697 = vunpack.c.l.b16 %v176
    %v698 = vunpack.c.h.b16 %v176
    %v699 = vunpack.c.l.b16 %v177
    %v700 = vunpack.c.h.b16 %v177
    %v701 = vunpack.c.l.b16 %v178
    %v702 = vunpack.c.h.b16 %v178
    %v703 = vunpack.c.l.b16 %v179
    %v704 = vunpack.c.h.b16 %v179
    %v705 = vunpack.c.l.b16 %v180
    %v706 = vunpack.c.h.b16 %v180
    %v707 = vunpack.c.l.b16 %v181
    %v708 = vunpack.c.h.b16 %v181
    %v709 = vunpack.c.l.b16 %v182
    %v710 = vunpack.c.h.b16 %v182
    %v711 = vunpack.c.l.b16 %v183
    %v712 = vunpack.c.l.b16 %v184
    %v713 = vunpack.c.h.b16 %v184
    %v714 = vunpack.c.l.b16 %v185
    %v715 = vunpack.c.h.b16 %v185
    %v716 = vunpack.c.l.b16 %v186
    %v717 = vunpack.c.h.b16 %v186
    %v718 = vunpack.c.l.b16 %v187
    %v719 = vunpack.c.h.b16 %v187
    %v720 = vunpack.c.l.b16 %v188
    %v721 = vunpack.c.h.b16 %v188
    %v722 = vunpack.c.l.b16 %v189
    %v723 = vunpack.c.h.b16 %v189
    %v724 = vunpack.c.l.b16 %v190
    %v725 = vunpack.c.h.b16 %v190
    %v726 = vunpack.c.l.b16 %v191
    %v727 = vunpack.c.h.b16 %v191
    %v728 = vunpack.c.l.b16 %v192
    %v729 = vunpack.c.h.b16 %v192
    %v730 = vunpack.c.l.b16 %v193
    %v731 = vunpack.c.h.b16 %v193
    %v732 = vunpack.c.l.b16 %v194
    %v733 = vunpack.c.l.b16 %v195
    %v734 = vunpack.c.h.b16 %v195
    %v735 = vunpack.c.l.b16 %v196
    %v736 = vunpack.c.h.b16 %v196
    %v737 = vunpack.c.l.b16 %v197
    %v738 = vunpack.c.h.b16 %v197
    %v739 = vunpack.c.l.b16 %v198
    %v740 = vunpack.c.h.b16 %v198
    %v741 = vunpack.c.l.b16 %v199
    %v742 = vunpack.c.h.b16 %v199
    %v743 = vunpack.c.l.b16 %v200
    %v744 = vunpack.c.h.b16 %v200
    %v745 = vunpack.c.l.b16 %v201
    %v746 = vunpack.c.h.b16 %v201
    %v747 = vunpack.c.l.b16 %v202
    %v748 = vunpack.c.h.b16 %v202
    %v749 = vunpack.c.l.b16 %v203
    %v750 = vunpack.c.h.b16 %v203
    %v751 = vunpack.c.l.b16 %v204
    %v752 = vunpack.c.h.b16 %v204
    %v753 = vunpack.c.l.b16 %v205
    %v754 = vunpack.c.l.b16 %v206
    %v755 = vunpack.c.h.b16 %v206
    %v756 = vunpack.c.l.b16 %v207
    %v757 = vunpack.c.h.b16 %v207
    %v758 = vunpack.c.l.b16 %v208
    %v759 = vunpack.c.h.b16 %v208
    %v760 = vunpack.c.l.b16 %v209
    %v761 = vunpack.c.h.b16 %v209
    %v762 = vunpack.c.l.b16 %v210
    %v763 = vunpack.c.h.b16 %v210
    %v764 = vunpack.c.l.b16 %v211
    %v765 = vunpack.c.h.b16 %v211
    %v766 = vunpack.c.l.b16 %v212
    %v767 = vunpack.c.h.b16 %v212
    %v768 = vunpack.c.l.b16 %v213
    %v769 = vunpack.c.h.b16 %v213
    %v770 = vunpack.c.l.b16 %v214
    %v771 = vunpack.c.h.b16 %v214
    %v772 = vunpack.c.l.b16 %v215
    %v773 = vunpack.c.h.b16 %v215
    %v774 = vunpack.c.l.b16 %v216
    %v775 = vunpack.c.l.b16 %v217
    %v776 = vunpack.c.h.b16 %v217
    %v777 = vunpack.c.l.b16 %v218
    %v778 = vunpack.c.h.b16 %v218
    %v779 = vunpack.c.l.b16 %v219
    %v780 = vunpack.c.h.b16 %v219
    %v781 = vunpack.c.l.b16 %v220
    %v782 = vunpack.c.h.b16 %v220
    %v783 = vunpack.c.l.b16 %v221
    %v784 = vunpack.c.h.b16 %v221
    %v785 = vunpack.c.l.b16 %v222
    %v786 = vunpack.c.h.b16 %v222
    %v787 = vunpack.c.l.b16 %v223
    %v788 = vunpack.c.h.b16 %v223
    %v789 = vunpack.c.l.b16 %v224
    %v790 = vunpack.c.h.b16 %v224
    %v791 = vunpack.c.l.b16 %v225
    %v792 = vunpack.c.h.b16 %v225
    %v793 = vunpack.c.l.b16 %v226
    %v794 = vunpack.c.h.b16 %v226
    %v795 = vunpack.c.l.b16 %v227
    %v796 = vunpack.c.l.b16 %v228
    %v797 = vunpack.c.h.b16 %v228
    %v798 = vunpack.c.l.b16 %v229
    %v799 = vunpack.c.h.b16 %v229
    %v800 = vunpack.c.l.b16 %v230
    %v801 = vunpack.c.h.b16 %v230
    %v802 = vunpack.c.l.b16 %v231
    %v803 = vunpack.c.h.b16 %v231
    %v804 = vunpack.c.l.b16 %v232
    %v805 = vunpack.c.h.b16 %v232
    %v806 = vunpack.c.l.b16 %v233
    %v807 = vunpack.c.h.b16 %v233
    %v808 = vunpack.c.l.b16 %v234
    %v809 = vunpack.c.h.b16 %v234
    %v810 = vunpack.c.l.b16 %v235
    %v811 = vunpack.c.h.b16 %v235
    %v812 = vunpack.c.l.b16 %v236
    %v813 = vunpack.c.h.b16 %v236
    %v814 = vunpack.c.l.b16 %v237
    %v815 = vunpack.c.h.b16 %v237
    %v816 = vunpack.c.l.b16 %v238
    %v817 = vunpack.c.l.b16 %v239
    %v818 = vunpack.c.h.b16 %v239
    %v819 = vunpack.c.l.b16 %v240
    %v820 = vunpack.c.h.b16 %v240
    %v821 = vunpack.c.l.b16 %v241
    %v822 = vunpack.c.h.b16 %v241
    %v823 = vunpack.c.l.b16 %v242
    %v824 = vunpack.c.h.b16 %v242
    %v825 = vunpack.c.l.b16 %v243
    %v826 = vunpack.c.h.b16 %v243
    %v827 = vunpack.c.l.b16 %v244
    %v828 = vunpack.c.h.b16 %v244
    %v829 = vunpack.c.l.b16 %v245
    %v830 = vunpack.c.h.b16 %v245
    %v831 = vunpack.c.l.b16 %v246
    %v832 = vunpack.c.h.b16 %v246
    %v833 = vunpack.c.l.b16 %v247
    %v834 = vunpack.c.h.b16 %v247
    %v835 = vunpack.c.l.b16 %v248
    %v836 = vunpack.c.h.b16 %v248
    %v837 = vunpack.c.l.b16 %v249
    %v838 = vunpack.c.l.b16 %v250
    %v839 = vunpack.c.h.b16 %v250
    %v840 = vunpack.c.l.b16 %v251
    %v841 = vunpack.c.h.b16 %v251
    %v842 = vunpack.c.l.b16 %v252
    %v843 = vunpack.c.h.b16 %v252
    %v844 = vunpack.c.l.b16 %v253
    %v845 = vunpack.c.h.b16 %v253
    %v846 = vunpack.c.l.b16 %v254
    %v847 = vunpack.c.h.b16 %v254
    %v848 = vunpack.c.l.b16 %v255
    %v849 = vunpack.c.h.b16 %v255
    %v850 = vunpack.c.l.b16 %v256
    %v851 = vunpack.c.h.b16 %v256
    %v852 = vunpack.c.l.b16 %v257
    %v853 = vunpack.c.h.b16 %v257
    %v854 = vunpack.c.l.b16 %v258
    %v855 = vunpack.c.h.b16 %v258
    %v856 = vunpack.c.l.b16 %v259
    %v857 = vunpack.c.h.b16 %v259
    %v858 = vunpack.c.l.b16 %v260
    %v859 = vunpack.c.l.b16 %v261
    %v860 = vunpack.c.h.b16 %v261
    %v861 = vunpack.c.l.b16 %v262
    %v862 = vunpack.c.h.b16 %v262
    %v863 = vunpack.c.l.b16 %v263
    %v864 = vunpack.c.h.b16 %v263
    %v865 = vunpack.c.l.b16 %v264
    %v866 = vunpack.c.h.b16 %v264
    %v867 = vunpack.c.l.b16 %v265
    %v868 = vunpack.c.h.b16 %v265
    %v869 = vunpack.c.l.b16 %v266
    %v870 = vunpack.c.h.b16 %v266
    %v871 = vunpack.c.l.b16 %v267
    %v872 = vunpack.c.h.b16 %v267
    %v873 = vunpack.c.l.b16 %v268
    %v874 = vunpack.c.h.b16 %v268
    %v875 = vunpack.c.l.b16 %v269
    %v876 = vunpack.c.h.b16 %v269
    %v877 = vunpack.c.l.b16 %v270
    %v878 = vunpack.c.h.b16 %v270
    %v879 = vunpack.c.l.b16 %v271
    %v880 = vpack.c.b16 %v502, %v481
    %v881 = vpack.c.b16 %v503, %v482
    %v882 = vpack.c.b16 %v504, %v483
    %v883 = vpack.c.b16 %v505, %v484
    %v884 = vpack.c.b16 %v506, %v485
    %v885 = vpack.c.b16 %v507, %v486
    %v886 = vpack.c.b16 %v508, %v487
    %v887 = vpack.c.b16 %v509, %v488
    %v888 = vpack.c.b16 %v510, %v489
    %v889 = vpack.c.b16 %v511, %v490
    %v890 = vpack.c.b16 %v512, %v491
    %v891 = vpack.c.b16 %v513, %v492
    %v892 = vpack.c.b16 %v514, %v493
    %v893 = vpack.c.b16 %v515, %v494
    %v894 = vpack.c.b16 %v516, %v495
    %v895 = vpack.c.b16 %v517, %v496
    %v896 = vpack.c.b16 %v518, %v497
    %v897 = vpack.c.b16 %v519, %v498
    %v898 = vpack.c.b16 %v520, %v499
    %v899 = vpack.c.b16 %v521, %v500
    %v900 = vpack.c.b16 %v522, %v501
    %v901 = vpack.c.b16 %v544, %v523
    %v902 = vpack.c.b16 %v545, %v524
    %v903 = vpack.c.b16 %v546, %v525
    %v904 = vpack.c.b16 %v547, %v526
    %v905 = vpack.c.b16 %v548, %v527
    %v906 = vpack.c.b16 %v549, %v528
    %v907 = vpack.c.b16 %v550, %v529
    %v908 = vpack.c.b16 %v551, %v530
    %v909 = vpack.c.b16 %v552, %v531
    %v910 = vpack.c.b16 %v553, %v532
    %v911 = vpack.c.b16 %v554, %v533
    %v912 = vpack.c.b16 %v555, %v534
    %v913 = vpack.c.b16 %v556, %v535
    %v914 = vpack.c.b16 %v557, %v536
    %v915 = vpack.c.b16 %v558, %v537
    %v916 = vpack.c.b16 %v559, %v538
    %v917 = vpack.c.b16 %v560, %v539
    %v918 = vpack.c.b16 %v561, %v540
    %v919 = vpack.c.b16 %v562, %v541
    %v920 = vpack.c.b16 %v563, %v542
    %v921 = vpack.c.b16 %v564, %v543
    %v922 = vpack.c.b16 %v586, %v565
    %v923 = vpack.c.b16 %v587, %v566
    %v924 = vpack.c.b16 %v588, %v567
    %v925 = vpack.c.b16 %v589, %v568
    %v926 = vpack.c.b16 %v590, %v569
    %v927 = vpack.c.b16 %v591, %v570
    %v928 = vpack.c.b16 %v592, %v571
    %v929 = vpack.c.b16 %v593, %v572
    %v930 = vpack.c.b16 %v594, %v573
    %v931 = vpack.c.b16 %v595, %v574
    %v932 = vpack.c.b16 %v596, %v575
    %v933 = vpack.c.b16 %v597, %v576
    %v934 = vpack.c.b16 %v598, %v577
    %v935 = vpack.c.b16 %v599, %v578
    %v936 = vpack.c.b16 %v600, %v579
    %v937 = vpack.c.b16 %v601, %v580
    %v938 = vpack.c.b16 %v602, %v581
    %v939 = vpack.c.b16 %v603, %v582
    %v940 = vpack.c.b16 %v604, %v583
    %v941 = vpack.c.b16 %v605, %v584
    %v942 = vpack.c.b16 %v606, %v585
    %v943 = vpack.c.b16 %v628, %v607
    %v944 = vpack.c.b16 %v629, %v608
    %v945 = vpack.c.b16 %v630, %v609
    %v946 = vpack.c.b16 %v631, %v610
    %v947 = vpack.c.b16 %v632, %v611
    %v948 = vpack.c.b16 %v633, %v612
    %v949 = vpack.c.b16 %v634, %v613
    %v950 = vpack.c.b16 %v635, %v614
    %v951 = vpack.c.b16 %v636, %v615
    %v952 = vpack.c.b16 %v637, %v616
    %v953 = vpack.c.b16 %v638, %v617
    %v954 = vpack.c.b16 %v639, %v618
    %v955 = vpack.c.b16 %v640, %v619
    %v956 = vpack.c.b16 %v641, %v620
    %v957 = vpack.c.b16 %v642, %v621
    %v958 = vpack.c.b16 %v643, %v622
    %v959 = vpack.c.b16 %v644, %v623
    %v960 = vpack.c.b16 %v645, %v624
    %v961 = vpack.c.b16 %v646, %v625
    %v962 = vpack.c.b16 %v647, %v626
    %v963 = vpack.c.b16 %v648, %v627
    %v964 = vpack.c.b16 %v670, %v649
    %v965 = vpack.c.b16 %v671, %v650
    %v966 = vpack.c.b16 %v672, %v651
    %v967 = vpack.c.b16 %v673, %v652
    %v968 = vpack.c.b16 %v674, %v653
    %v969 = vpack.c.b16 %v675, %v654
    %v970 = vpack.c.b16 %v676, %v655
    %v971 = vpack.c.b16 %v677, %v656
    %v972 = vpack.c.b16 %v678, %v657
    %v973 = vpack.c.b16 %v679, %v658
    %v974 = vpack.c.b16 %v680, %v659
    %v975 = vpack.c.b16 %v681, %v660
    %v976 = vpack.c.b16 %v682, %v661
    %v977 = vpack.c.b16 %v683, %v662
    %v978 = vpack.c.b16 %v684, %v663
    %v979 = vpack.c.b16 %v685, %v664
    %v980 = vpack.c.b16 %v686, %v665
    %v981 = vpack.c.b16 %v687, %v666
    %v982 = vpack.c.b16 %v688, %v667
    %v983 = vpack.c.b16 %v689, %v668
    %v984 = vpack.c.b16 %v690, %v669
    %v985 = vpack.c.b16 %v712, %v691
    %v986 = vpack.c.b16 %v713, %v692
    %v987 = vpack.c.b16 %v714, %v693
    %v988 = vpack.c.b16 %v715, %v694
    %v989 = vpack.c.b16 %v716, %v695
    %v990 = vpack.c.b16 %v717, %v696
    %v991 = vpack.c.b16 %v718, %v697
    %v992 = vpack.c.b16 %v719, %v698
    %v993 = vpack.c.b16 %v720, %v699
    %v994 = vpack.c.b16 %v721, %v700
    %v995 = vpack.c.b16 %v722, %v701
    %v996 = vpack.c.b16 %v723, %v702
    %v997 = vpack.c.b16 %v724, %v703
    %v998 = vpack.c.b16 %v725, %v704
    %v999 = vpack.c.b16 %v726, %v705
    %v1000 = vpack.c.b16 %v727, %v706
    %v1001 = vpack.c.b16 %v728, %v707
    %v1002 = vpack.c.b16 %v729, %v708
    %v1003 = vpack.c.b16 %v730, %v709
    %v1004 = vpack.c.b16 %v731, %v710
    %v1005 = vpack.c.b16 %v732, %v711
    %v1006 = vpack.c.b16 %v754, %v733
    %v1007 = vpack.c.b16 %v755, %v734
    %v1008 = vpack.c.b16 %v756, %v735
    %v1009 = vpack.c.b16 %v757, %v736
    %v1010 = vpack.c.b16 %v758, %v737
    %v1011 = vpack.c.b16 %v759, %v738
    %v1012 = vpack.c.b16 %v760, %v739
    %v1013 = vpack.c.b16 %v761, %v740
    %v1014 = vpack.c.b16 %v762, %v741
    %v1015 = vpack.c.b16 %v763, %v742
    %v1016 = vpack.c.b16 %v764, %v743
    %v1017 = vpack.c.b16 %v765, %v744
    %v1018 = vpack.c.b16 %v766, %v745
    %v1019 = vpack.c.b16 %v767, %v746
    %v1020 = vpack.c.b16 %v768, %v747
    %v1021 = vpack.c.b16 %v769, %v748
    %v1022 = vpack.c.b16 %v770, %v749
    %v1023 = vpack.c.b16 %v771, %v750
    %v1024 = vpack.c.b16 %v772, %v751
    %v1025 = vpack.c.b16 %v773, %v752
    %v1026 = vpack.c.b16 %v774, %v753
    %v1027 = vpack.c.b16 %v796, %v775
    %v1028 = vpack.c.b16 %v797, %v776
    %v1029 = vpack.c.b16 %v798, %v777
    %v1030 = vpack.c.b16 %v799, %v778
    %v1031 = vpack.c.b16 %v800, %v779
    %v1032 = vpack.c.b16 %v801, %v780
    %v1033 = vpack.c.b16 %v802, %v781
    %v1034 = vpack.c.b16 %v803, %v782
    %v1035 = vpack.c.b16 %v804, %v783
    %v1036 = vpack.c.b16 %v805, %v784
    %v1037 = vpack.c.b16 %v806, %v785
    %v1038 = vpack.c.b16 %v807, %v786
    %v1039 = vpack.c.b16 %v808, %v787
    %v1040 = vpack.c.b16 %v809, %v788
    %v1041 = vpack.c.b16 %v810, %v789
    %v1042 = vpack.c.b16 %v811, %v790
    %v1043 = vpack.c.b16 %v812, %v791
    %v1044 = vpack.c.b16 %v813, %v792
    %v1045 = vpack.c.b16 %v814, %v793
    %v1046 = vpack.c.b16 %v815, %v794
    %v1047 = vpack.c.b16 %v816, %v795
    %v1048 = vpack.c.b16 %v838, %v817
    %v1049 = vpack.c.b16 %v839, %v818
    %v1050 = vpack.c.b16 %v840, %v819
    %v1051 = vpack.c.b16 %v841, %v820
    %v1052 = vpack.c.b16 %v842, %v821
    %v1053 = vpack.c.b16 %v843, %v822
    %v1054 = vpack.c.b16 %v844, %v823
    %v1055 = vpack.c.b16 %v845, %v824
    %v1056 = vpack.c.b16 %v846, %v825
    %v1057 = vpack.c.b16 %v847, %v826
    %v1058 = vpack.c.b16 %v848, %v827
    %v1059 = vpack.c.b16 %v849, %v828
    %v1060 = vpack.c.b16 %v850, %v829
    %v1061 = vpack.c.b16 %v851, %v830
    %v1062 = vpack.c.b16 %v852, %v831
    %v1063 = vpack.c.b16 %v853, %v832
    %v1064 = vpack.c.b16 %v854, %v833
    %v1065 = vpack.c.b16 %v855, %v834
    %v1066 = vpack.c.b16 %v856, %v835
    %v1067 = vpack.c.b16 %v857, %v836
    %v1068 = vpack.c.b16 %v858, %v837
    %v1069 = vpack.c.b16 %v859, %v859
    %v1070 = vpack.c.b16 %v860, %v860
    %v1071 = vpack.c.b16 %v861, %v861
    %v1072 = vpack.c.b16 %v862, %v862
    %v1073 = vpack.c.b16 %v863, %v863
    %v1074 = vpack.c.b16 %v864, %v864
    %v1075 = vpack.c.b16 %v865, %v865
    %v1076 = vpack.c.b16 %v866, %v866
    %v1077 = vpack.c.b16 %v867, %v867
    %v1078 = vpack.c.b16 %v868, %v868
    %v1079 = vpack.c.b16 %v869, %v869
    %v1080 = vpack.c.b16 %v870, %v870
    %v1081 = vpack.c.b16 %v871, %v871
    %v1082 = vpack.c.b16 %v872, %v872
    %v1083 = vpack.c.b16 %v873, %v873
    %v1084 = vpack.c.b16 %v874, %v874
    %v1085 = vpack.c.b16 %v875, %v875
    %v1086 = vpack.c.b16 %v876, %v876
    %v1087 = vpack.c.b16 %v877, %v877
    %v1088 = vpack.c.b16 %v878, %v878
    %v1089 = vpack.c.b16 %v879, %v879
    %vm1279 = vcmask 138240
    %v1281 = vsel %vm1279, %v62, 0
    %vm1283 = vcmask 1040384
    %v1284 = vsel 0, 4294967295, 65535
    %v1285 = vsel %vm1283, %v1284, 0
    %v1287 = vand.u32 %v1069, %v1285
    %v1290 = vand.u32 %v1070, %v1285
    %v1293 = vand.u32 %v1071, %v1285
    %v1296 = vand.u32 %v1072, %v1285
    %v1299 = vand.u32 %v1073, %v1285
    %v1302 = vand.u32 %v1074, %v1285
    %v1305 = vand.u32 %v1075, %v1285
    %v1308 = vand.u32 %v1076, %v1285
    %v1311 = vand.u32 %v1077, %v1285
    %v1314 = vand.u32 %v1078, %v1285
    %v1317 = vand.u32 %v1079, %v1285
    %v1320 = vand.u32 %v1080, %v1285
    %v1323 = vand.u32 %v1081, %v1285
    %v1326 = vand.u32 %v1082, %v1285
    %v1329 = vand.u32 %v1083, %v1285
    %v1332 = vand.u32 %v1084, %v1285
    %v1335 = vand.u32 %v1085, %v1285
    %v1338 = vand.u32 %v1086, %v1285
    %v1341 = vand.u32 %v1087, %v1285
    %v1344 = vand.u32 %v1088, %v1285
    %v1347 = vand.u32 %v1089, %v1285
    %1349 = vmatprep.subr.bf16.mxu0 %v881
    %1350 = vmatpush1.bf16.msra.mxu0 %v880
    %1351 = vmatprep.subr.bf16.mxu0 %v902
    %1352 = vmatpush1.bf16.msra.mxu0 %v901
    %1353 = vmatprep.subr.bf16.mxu0 %v923
    %1354 = vmatpush1.bf16.msra.mxu0 %v922
    %1355 = vmatprep.subr.bf16.mxu0 %v944
    %1356 = vmatpush1.bf16.msra.mxu0 %v943
    %1357 = vmatprep.subr.bf16.mxu0 %v965
    %1358 = vmatpush1.bf16.msra.mxu0 %v964
    %1359 = vmatprep.subr.bf16.mxu0 %v986
    %1360 = vmatpush1.bf16.msra.mxu0 %v985
    %1361 = vmatprep.subr.bf16.mxu0 %v1007
    %1362 = vmatpush1.bf16.msra.mxu0 %v1006
    %1363 = vmatprep.subr.bf16.mxu0 %v1028
    %1364 = vmatpush1.bf16.msra.mxu0 %v1027
    %1365 = vmatprep.subr.bf16.mxu0 %v1049
    %1366 = vmatpush1.bf16.msra.mxu0 %v1048
    %1367 = vmatprep.subr.bf16.mxu0 %v1290
    %1368 = vmatpush1.bf16.msra.mxu0 %v1287
    %1369 = vmatprep.subr.bf16.mxu0 0
    %1370 = vmatpush1.bf16.msra.mxu0 0
    %1371 = vmatprep.subr.bf16.mxu0 0
    %1372 = vmatpush1.bf16.msra.mxu0 0
    %1373 = vmatprep.subr.bf16.mxu0 0
    %1374 = vmatpush1.bf16.msra.mxu0 0
    %1375 = vmatprep.subr.bf16.mxu0 0
    %1376 = vmatpush1.bf16.msra.mxu0 0
    %1377 = vmatprep.subr.bf16.mxu0 0
    %1378 = vmatpush1.bf16.msra.mxu0 0
    %1379 = vmatprep.subr.bf16.mxu0 0
    %1380 = vmatpush1.bf16.msra.mxu0 0
    %1381 = vmatprep.mubr.bf16.mxu0 %v1281
    %1382 = vmatmul.mubr.bf16.gmra.mrb[0].mxu0 %v61
    %v1383 = vpop.f32.mrb[0].mxu0
    %v1384 = vadd.f32 0.0, %v1383
    %v1385 = vpop.f32.mrb[0].mxu0
    %v1386 = vadd.f32 0.0, %v1385
    %v1387 = vpop.f32.mrb[0].mxu0
    %v1388 = vpop.f32.mrb[0].mxu0
    %1389 = vdwg.mxu0
    %1390 = vmatprep.subr.bf16.mxu0 %v883
    %1391 = vmatpush1.bf16.msra.mxu0 %v882
    %1392 = vmatprep.subr.bf16.mxu0 %v904
    %1393 = vmatpush1.bf16.msra.mxu0 %v903
    %1394 = vmatprep.subr.bf16.mxu0 %v925
    %1395 = vmatpush1.bf16.msra.mxu0 %v924
    %1396 = vmatprep.subr.bf16.mxu0 %v946
    %1397 = vmatpush1.bf16.msra.mxu0 %v945
    %1398 = vmatprep.subr.bf16.mxu0 %v967
    %1399 = vmatpush1.bf16.msra.mxu0 %v966
    %1400 = vmatprep.subr.bf16.mxu0 %v988
    %1401 = vmatpush1.bf16.msra.mxu0 %v987
    %1402 = vmatprep.subr.bf16.mxu0 %v1009
    %1403 = vmatpush1.bf16.msra.mxu0 %v1008
    %1404 = vmatprep.subr.bf16.mxu0 %v1030
    %1405 = vmatpush1.bf16.msra.mxu0 %v1029
    %1406 = vmatprep.subr.bf16.mxu0 %v1051
    %1407 = vmatpush1.bf16.msra.mxu0 %v1050
    %1408 = vmatprep.subr.bf16.mxu0 %v1296
    %1409 = vmatpush1.bf16.msra.mxu0 %v1293
    %1410 = vmatprep.subr.bf16.mxu0 0
    %1411 = vmatpush1.bf16.msra.mxu0 0
    %1412 = vmatprep.subr.bf16.mxu0 0
    %1413 = vmatpush1.bf16.msra.mxu0 0
    %1414 = vmatprep.subr.bf16.mxu0 0
    %1415 = vmatpush1.bf16.msra.mxu0 0
    %1416 = vmatprep.subr.bf16.mxu0 0
    %1417 = vmatpush1.bf16.msra.mxu0 0
    %1418 = vmatprep.subr.bf16.mxu0 0
    %1419 = vmatpush1.bf16.msra.mxu0 0
    %1420 = vmatprep.subr.bf16.mxu0 0
    %1421 = vmatpush1.bf16.msra.mxu0 0
    %1422 = vmatprep.mubr.bf16.mxu0 %v1281
    %1423 = vmatmul.mubr.bf16.gmra.mrb[0].mxu0 %v61
    %v1424 = vpop.f32.mrb[0].mxu0
    %v1425 = vadd.f32 0.0, %v1424
    %v1426 = vpop.f32.mrb[0].mxu0
    %v1427 = vadd.f32 0.0, %v1426
    %v1428 = vpop.f32.mrb[0].mxu0
    %v1429 = vpop.f32.mrb[0].mxu0
    %1430 = vdwg.mxu0
    %1431 = vmatprep.subr.bf16.mxu0 %v885
    %1432 = vmatpush1.bf16.msra.mxu0 %v884
    %1433 = vmatprep.subr.bf16.mxu0 %v906
    %1434 = vmatpush1.bf16.msra.mxu0 %v905
    %1435 = vmatprep.subr.bf16.mxu0 %v927
    %1436 = vmatpush1.bf16.msra.mxu0 %v926
    %1437 = vmatprep.subr.bf16.mxu0 %v948
    %1438 = vmatpush1.bf16.msra.mxu0 %v947
    %1439 = vmatprep.subr.bf16.mxu0 %v969
    %1440 = vmatpush1.bf16.msra.mxu0 %v968
    %1441 = vmatprep.subr.bf16.mxu0 %v990
    %1442 = vmatpush1.bf16.msra.mxu0 %v989
    %1443 = vmatprep.subr.bf16.mxu0 %v1011
    %1444 = vmatpush1.bf16.msra.mxu0 %v1010
    %1445 = vmatprep.subr.bf16.mxu0 %v1032
    %1446 = vmatpush1.bf16.msra.mxu0 %v1031
    %1447 = vmatprep.subr.bf16.mxu0 %v1053
    %1448 = vmatpush1.bf16.msra.mxu0 %v1052
    %1449 = vmatprep.subr.bf16.mxu0 %v1302
    %1450 = vmatpush1.bf16.msra.mxu0 %v1299
    %1451 = vmatprep.subr.bf16.mxu0 0
    %1452 = vmatpush1.bf16.msra.mxu0 0
    %1453 = vmatprep.subr.bf16.mxu0 0
    %1454 = vmatpush1.bf16.msra.mxu0 0
    %1455 = vmatprep.subr.bf16.mxu0 0
    %1456 = vmatpush1.bf16.msra.mxu0 0
    %1457 = vmatprep.subr.bf16.mxu0 0
    %1458 = vmatpush1.bf16.msra.mxu0 0
    %1459 = vmatprep.subr.bf16.mxu0 0
    %1460 = vmatpush1.bf16.msra.mxu0 0
    %1461 = vmatprep.subr.bf16.mxu0 0
    %1462 = vmatpush1.bf16.msra.mxu0 0
    %1463 = vmatprep.mubr.bf16.mxu0 %v1281
    %1464 = vmatmul.mubr.bf16.gmra.mrb[0].mxu0 %v61
    %v1465 = vpop.f32.mrb[0].mxu0
    %v1466 = vadd.f32 0.0, %v1465
    %v1467 = vpop.f32.mrb[0].mxu0
    %v1468 = vadd.f32 0.0, %v1467
    %v1469 = vpop.f32.mrb[0].mxu0
    %v1470 = vpop.f32.mrb[0].mxu0
    %1471 = vdwg.mxu0
    %1472 = vmatprep.subr.bf16.mxu0 %v887
    %1473 = vmatpush1.bf16.msra.mxu0 %v886
    %1474 = vmatprep.subr.bf16.mxu0 %v908
    %1475 = vmatpush1.bf16.msra.mxu0 %v907
    %1476 = vmatprep.subr.bf16.mxu0 %v929
    %1477 = vmatpush1.bf16.msra.mxu0 %v928
    %1478 = vmatprep.subr.bf16.mxu0 %v950
    %1479 = vmatpush1.bf16.msra.mxu0 %v949
    %1480 = vmatprep.subr.bf16.mxu0 %v971
    %1481 = vmatpush1.bf16.msra.mxu0 %v970
    %1482 = vmatprep.subr.bf16.mxu0 %v992
    %1483 = vmatpush1.bf16.msra.mxu0 %v991
    %1484 = vmatprep.subr.bf16.mxu0 %v1013
    %1485 = vmatpush1.bf16.msra.mxu0 %v1012
    %1486 = vmatprep.subr.bf16.mxu0 %v1034
    %1487 = vmatpush1.bf16.msra.mxu0 %v1033
    %1488 = vmatprep.subr.bf16.mxu0 %v1055
    %1489 = vmatpush1.bf16.msra.mxu0 %v1054
    %1490 = vmatprep.subr.bf16.mxu0 %v1308
    %1491 = vmatpush1.bf16.msra.mxu0 %v1305
    %1492 = vmatprep.subr.bf16.mxu0 0
    %1493 = vmatpush1.bf16.msra.mxu0 0
    %1494 = vmatprep.subr.bf16.mxu0 0
    %1495 = vmatpush1.bf16.msra.mxu0 0
    %1496 = vmatprep.subr.bf16.mxu0 0
    %1497 = vmatpush1.bf16.msra.mxu0 0
    %1498 = vmatprep.subr.bf16.mxu0 0
    %1499 = vmatpush1.bf16.msra.mxu0 0
    %1500 = vmatprep.subr.bf16.mxu0 0
    %1501 = vmatpush1.bf16.msra.mxu0 0
    %1502 = vmatprep.subr.bf16.mxu0 0
    %1503 = vmatpush1.bf16.msra.mxu0 0
    %1504 = vmatprep.mubr.bf16.mxu0 %v1281
    %1505 = vmatmul.mubr.bf16.gmra.mrb[0].mxu0 %v61
    %v1506 = vpop.f32.mrb[0].mxu0
    %v1507 = vadd.f32 0.0, %v1506
    %v1508 = vpop.f32.mrb[0].mxu0
    %v1509 = vadd.f32 0.0, %v1508
    %v1510 = vpop.f32.mrb[0].mxu0
    %v1511 = vpop.f32.mrb[0].mxu0
    %1512 = vdwg.mxu0
    %1513 = vmatprep.subr.bf16.mxu0 %v889
    %1514 = vmatpush1.bf16.msra.mxu0 %v888
    %1515 = vmatprep.subr.bf16.mxu0 %v910
    %1516 = vmatpush1.bf16.msra.mxu0 %v909
    %1517 = vmatprep.subr.bf16.mxu0 %v931
    %1518 = vmatpush1.bf16.msra.mxu0 %v930
    %1519 = vmatprep.subr.bf16.mxu0 %v952
    %1520 = vmatpush1.bf16.msra.mxu0 %v951
    %1521 = vmatprep.subr.bf16.mxu0 %v973
    %1522 = vmatpush1.bf16.msra.mxu0 %v972
    %1523 = vmatprep.subr.bf16.mxu0 %v994
    %1524 = vmatpush1.bf16.msra.mxu0 %v993
    %1525 = vmatprep.subr.bf16.mxu0 %v1015
    %1526 = vmatpush1.bf16.msra.mxu0 %v1014
    %1527 = vmatprep.subr.bf16.mxu0 %v1036
    %1528 = vmatpush1.bf16.msra.mxu0 %v1035
    %1529 = vmatprep.subr.bf16.mxu0 %v1057
    %1530 = vmatpush1.bf16.msra.mxu0 %v1056
    %1531 = vmatprep.subr.bf16.mxu0 %v1314
    %1532 = vmatpush1.bf16.msra.mxu0 %v1311
    %1533 = vmatprep.subr.bf16.mxu0 0
    %1534 = vmatpush1.bf16.msra.mxu0 0
    %1535 = vmatprep.subr.bf16.mxu0 0
    %1536 = vmatpush1.bf16.msra.mxu0 0
    %1537 = vmatprep.subr.bf16.mxu0 0
    %1538 = vmatpush1.bf16.msra.mxu0 0
    %1539 = vmatprep.subr.bf16.mxu0 0
    %1540 = vmatpush1.bf16.msra.mxu0 0
    %1541 = vmatprep.subr.bf16.mxu0 0
    %1542 = vmatpush1.bf16.msra.mxu0 0
    %1543 = vmatprep.subr.bf16.mxu0 0
    %1544 = vmatpush1.bf16.msra.mxu0 0
    %1545 = vmatprep.mubr.bf16.mxu0 %v1281
    %1546 = vmatmul.mubr.bf16.gmra.mrb[0].mxu0 %v61
    %v1547 = vpop.f32.mrb[0].mxu0
    %v1548 = vadd.f32 0.0, %v1547
    %v1549 = vpop.f32.mrb[0].mxu0
    %v1550 = vadd.f32 0.0, %v1549
    %v1551 = vpop.f32.mrb[0].mxu0
    %v1552 = vpop.f32.mrb[0].mxu0
    %1553 = vdwg.mxu0
    %1554 = vmatprep.subr.bf16.mxu0 %v891
    %1555 = vmatpush1.bf16.msra.mxu0 %v890
    %1556 = vmatprep.subr.bf16.mxu0 %v912
    %1557 = vmatpush1.bf16.msra.mxu0 %v911
    %1558 = vmatprep.subr.bf16.mxu0 %v933
    %1559 = vmatpush1.bf16.msra.mxu0 %v932
    %1560 = vmatprep.subr.bf16.mxu0 %v954
    %1561 = vmatpush1.bf16.msra.mxu0 %v953
    %1562 = vmatprep.subr.bf16.mxu0 %v975
    %1563 = vmatpush1.bf16.msra.mxu0 %v974
    %1564 = vmatprep.subr.bf16.mxu0 %v996
    %1565 = vmatpush1.bf16.msra.mxu0 %v995
    %1566 = vmatprep.subr.bf16.mxu0 %v1017
    %1567 = vmatpush1.bf16.msra.mxu0 %v1016
    %1568 = vmatprep.subr.bf16.mxu0 %v1038
    %1569 = vmatpush1.bf16.msra.mxu0 %v1037
    %1570 = vmatprep.subr.bf16.mxu0 %v1059
    %1571 = vmatpush1.bf16.msra.mxu0 %v1058
    %1572 = vmatprep.subr.bf16.mxu0 %v1320
    %1573 = vmatpush1.bf16.msra.mxu0 %v1317
    %1574 = vmatprep.subr.bf16.mxu0 0
    %1575 = vmatpush1.bf16.msra.mxu0 0
    %1576 = vmatprep.subr.bf16.mxu0 0
    %1577 = vmatpush1.bf16.msra.mxu0 0
    %1578 = vmatprep.subr.bf16.mxu0 0
    %1579 = vmatpush1.bf16.msra.mxu0 0
    %1580 = vmatprep.subr.bf16.mxu0 0
    %1581 = vmatpush1.bf16.msra.mxu0 0
    %1582 = vmatprep.subr.bf16.mxu0 0
    %1583 = vmatpush1.bf16.msra.mxu0 0
    %1584 = vmatprep.subr.bf16.mxu0 0
    %1585 = vmatpush1.bf16.msra.mxu0 0
    %1586 = vmatprep.mubr.bf16.mxu0 %v1281
    %1587 = vmatmul.mubr.bf16.gmra.mrb[0].mxu0 %v61
    %v1588 = vpop.f32.mrb[0].mxu0
    %v1589 = vadd.f32 0.0, %v1588
    %v1590 = vpop.f32.mrb[0].mxu0
    %v1591 = vadd.f32 0.0, %v1590
    %v1592 = vpop.f32.mrb[0].mxu0
    %v1593 = vpop.f32.mrb[0].mxu0
    %1594 = vdwg.mxu0
    %1595 = vmatprep.subr.bf16.mxu0 %v893
    %1596 = vmatpush1.bf16.msra.mxu0 %v892
    %1597 = vmatprep.subr.bf16.mxu0 %v914
    %1598 = vmatpush1.bf16.msra.mxu0 %v913
    %1599 = vmatprep.subr.bf16.mxu0 %v935
    %1600 = vmatpush1.bf16.msra.mxu0 %v934
    %1601 = vmatprep.subr.bf16.mxu0 %v956
    %1602 = vmatpush1.bf16.msra.mxu0 %v955
    %1603 = vmatprep.subr.bf16.mxu0 %v977
    %1604 = vmatpush1.bf16.msra.mxu0 %v976
    %1605 = vmatprep.subr.bf16.mxu0 %v998
    %1606 = vmatpush1.bf16.msra.mxu0 %v997
    %1607 = vmatprep.subr.bf16.mxu0 %v1019
    %1608 = vmatpush1.bf16.msra.mxu0 %v1018
    %1609 = vmatprep.subr.bf16.mxu0 %v1040
    %1610 = vmatpush1.bf16.msra.mxu0 %v1039
    %1611 = vmatprep.subr.bf16.mxu0 %v1061
    %1612 = vmatpush1.bf16.msra.mxu0 %v1060
    %1613 = vmatprep.subr.bf16.mxu0 %v1326
    %1614 = vmatpush1.bf16.msra.mxu0 %v1323
    %1615 = vmatprep.subr.bf16.mxu0 0
    %1616 = vmatpush1.bf16.msra.mxu0 0
    %1617 = vmatprep.subr.bf16.mxu0 0
    %1618 = vmatpush1.bf16.msra.mxu0 0
    %1619 = vmatprep.subr.bf16.mxu0 0
    %1620 = vmatpush1.bf16.msra.mxu0 0
    %1621 = vmatprep.subr.bf16.mxu0 0
    %1622 = vmatpush1.bf16.msra.mxu0 0
    %1623 = vmatprep.subr.bf16.mxu0 0
    %1624 = vmatpush1.bf16.msra.mxu0 0
    %1625 = vmatprep.subr.bf16.mxu0 0
    %1626 = vmatpush1.bf16.msra.mxu0 0
    %1627 = vmatprep.mubr.bf16.mxu0 %v1281
    %1628 = vmatmul.mubr.bf16.gmra.mrb[0].mxu0 %v61
    %v1629 = vpop.f32.mrb[0].mxu0
    %v1630 = vadd.f32 0.0, %v1629
    %v1631 = vpop.f32.mrb[0].mxu0
    %v1632 = vadd.f32 0.0, %v1631
    %v1633 = vpop.f32.mrb[0].mxu0
    %v1634 = vpop.f32.mrb[0].mxu0
    %1635 = vdwg.mxu0
    %1636 = vmatprep.subr.bf16.mxu0 %v895
    %1637 = vmatpush1.bf16.msra.mxu0 %v894
    %1638 = vmatprep.subr.bf16.mxu0 %v916
    %1639 = vmatpush1.bf16.msra.mxu0 %v915
    %1640 = vmatprep.subr.bf16.mxu0 %v937
    %1641 = vmatpush1.bf16.msra.mxu0 %v936
    %1642 = vmatprep.subr.bf16.mxu0 %v958
    %1643 = vmatpush1.bf16.msra.mxu0 %v957
    %1644 = vmatprep.subr.bf16.mxu0 %v979
    %1645 = vmatpush1.bf16.msra.mxu0 %v978
    %1646 = vmatprep.subr.bf16.mxu0 %v1000
    %1647 = vmatpush1.bf16.msra.mxu0 %v999
    %1648 = vmatprep.subr.bf16.mxu0 %v1021
    %1649 = vmatpush1.bf16.msra.mxu0 %v1020
    %1650 = vmatprep.subr.bf16.mxu0 %v1042
    %1651 = vmatpush1.bf16.msra.mxu0 %v1041
    %1652 = vmatprep.subr.bf16.mxu0 %v1063
    %1653 = vmatpush1.bf16.msra.mxu0 %v1062
    %1654 = vmatprep.subr.bf16.mxu0 %v1332
    %1655 = vmatpush1.bf16.msra.mxu0 %v1329
    %1656 = vmatprep.subr.bf16.mxu0 0
    %1657 = vmatpush1.bf16.msra.mxu0 0
    %1658 = vmatprep.subr.bf16.mxu0 0
    %1659 = vmatpush1.bf16.msra.mxu0 0
    %1660 = vmatprep.subr.bf16.mxu0 0
    %1661 = vmatpush1.bf16.msra.mxu0 0
    %1662 = vmatprep.subr.bf16.mxu0 0
    %1663 = vmatpush1.bf16.msra.mxu0 0
    %1664 = vmatprep.subr.bf16.mxu0 0
    %1665 = vmatpush1.bf16.msra.mxu0 0
    %1666 = vmatprep.subr.bf16.mxu0 0
    %1667 = vmatpush1.bf16.msra.mxu0 0
    %1668 = vmatprep.mubr.bf16.mxu0 %v1281
    %1669 = vmatmul.mubr.bf16.gmra.mrb[0].mxu0 %v61
    %v1670 = vpop.f32.mrb[0].mxu0
    %v1671 = vadd.f32 0.0, %v1670
    %v1672 = vpop.f32.mrb[0].mxu0
    %v1673 = vadd.f32 0.0, %v1672
    %v1674 = vpop.f32.mrb[0].mxu0
    %v1675 = vpop.f32.mrb[0].mxu0
    %1676 = vdwg.mxu0
    %1677 = vmatprep.subr.bf16.mxu0 %v897
    %1678 = vmatpush1.bf16.msra.mxu0 %v896
    %1679 = vmatprep.subr.bf16.mxu0 %v918
    %1680 = vmatpush1.bf16.msra.mxu0 %v917
    %1681 = vmatprep.subr.bf16.mxu0 %v939
    %1682 = vmatpush1.bf16.msra.mxu0 %v938
    %1683 = vmatprep.subr.bf16.mxu0 %v960
    %1684 = vmatpush1.bf16.msra.mxu0 %v959
    %1685 = vmatprep.subr.bf16.mxu0 %v981
    %1686 = vmatpush1.bf16.msra.mxu0 %v980
    %1687 = vmatprep.subr.bf16.mxu0 %v1002
    %1688 = vmatpush1.bf16.msra.mxu0 %v1001
    %1689 = vmatprep.subr.bf16.mxu0 %v1023
    %1690 = vmatpush1.bf16.msra.mxu0 %v1022
    %1691 = vmatprep.subr.bf16.mxu0 %v1044
    %1692 = vmatpush1.bf16.msra.mxu0 %v1043
    %1693 = vmatprep.subr.bf16.mxu0 %v1065
    %1694 = vmatpush1.bf16.msra.mxu0 %v1064
    %1695 = vmatprep.subr.bf16.mxu0 %v1338
    %1696 = vmatpush1.bf16.msra.mxu0 %v1335
    %1697 = vmatprep.subr.bf16.mxu0 0
    %1698 = vmatpush1.bf16.msra.mxu0 0
    %1699 = vmatprep.subr.bf16.mxu0 0
    %1700 = vmatpush1.bf16.msra.mxu0 0
    %1701 = vmatprep.subr.bf16.mxu0 0
    %1702 = vmatpush1.bf16.msra.mxu0 0
    %1703 = vmatprep.subr.bf16.mxu0 0
    %1704 = vmatpush1.bf16.msra.mxu0 0
    %1705 = vmatprep.subr.bf16.mxu0 0
    %1706 = vmatpush1.bf16.msra.mxu0 0
    %1707 = vmatprep.subr.bf16.mxu0 0
    %1708 = vmatpush1.bf16.msra.mxu0 0
    %1709 = vmatprep.mubr.bf16.mxu0 %v1281
    %1710 = vmatmul.mubr.bf16.gmra.mrb[0].mxu0 %v61
    %v1711 = vpop.f32.mrb[0].mxu0
    %v1712 = vadd.f32 0.0, %v1711
    %v1713 = vpop.f32.mrb[0].mxu0
    %v1714 = vadd.f32 0.0, %v1713
    %v1715 = vpop.f32.mrb[0].mxu0
    %v1716 = vpop.f32.mrb[0].mxu0
    %1717 = vdwg.mxu0
    %1718 = vmatprep.subr.bf16.mxu0 %v899
    %1719 = vmatpush1.bf16.msra.mxu0 %v898
    %1720 = vmatprep.subr.bf16.mxu0 %v920
    %1721 = vmatpush1.bf16.msra.mxu0 %v919
    %1722 = vmatprep.subr.bf16.mxu0 %v941
    %1723 = vmatpush1.bf16.msra.mxu0 %v940
    %1724 = vmatprep.subr.bf16.mxu0 %v962
    %1725 = vmatpush1.bf16.msra.mxu0 %v961
    %1726 = vmatprep.subr.bf16.mxu0 %v983
    %1727 = vmatpush1.bf16.msra.mxu0 %v982
    %1728 = vmatprep.subr.bf16.mxu0 %v1004
    %1729 = vmatpush1.bf16.msra.mxu0 %v1003
    %1730 = vmatprep.subr.bf16.mxu0 %v1025
    %1731 = vmatpush1.bf16.msra.mxu0 %v1024
    %1732 = vmatprep.subr.bf16.mxu0 %v1046
    %1733 = vmatpush1.bf16.msra.mxu0 %v1045
    %1734 = vmatprep.subr.bf16.mxu0 %v1067
    %1735 = vmatpush1.bf16.msra.mxu0 %v1066
    %1736 = vmatprep.subr.bf16.mxu0 %v1344
    %1737 = vmatpush1.bf16.msra.mxu0 %v1341
    %1738 = vmatprep.subr.bf16.mxu0 0
    %1739 = vmatpush1.bf16.msra.mxu0 0
    %1740 = vmatprep.subr.bf16.mxu0 0
    %1741 = vmatpush1.bf16.msra.mxu0 0
    %1742 = vmatprep.subr.bf16.mxu0 0
    %1743 = vmatpush1.bf16.msra.mxu0 0
    %1744 = vmatprep.subr.bf16.mxu0 0
    %1745 = vmatpush1.bf16.msra.mxu0 0
    %1746 = vmatprep.subr.bf16.mxu0 0
    %1747 = vmatpush1.bf16.msra.mxu0 0
    %1748 = vmatprep.subr.bf16.mxu0 0
    %1749 = vmatpush1.bf16.msra.mxu0 0
    %1750 = vmatprep.mubr.bf16.mxu0 %v1281
    %1751 = vmatmul.mubr.bf16.gmra.mrb[0].mxu0 %v61
    %v1752 = vpop.f32.mrb[0].mxu0
    %v1753 = vadd.f32 0.0, %v1752
    %v1754 = vpop.f32.mrb[0].mxu0
    %v1755 = vadd.f32 0.0, %v1754
    %v1756 = vpop.f32.mrb[0].mxu0
    %v1757 = vpop.f32.mrb[0].mxu0
    %1758 = vdwg.mxu0
    %1759 = vmatprep.subr.bf16.mxu0 0
    %1760 = vmatpush1.bf16.msra.mxu0 %v900
    %1761 = vmatprep.subr.bf16.mxu0 0
    %1762 = vmatpush1.bf16.msra.mxu0 %v921
    %1763 = vmatprep.subr.bf16.mxu0 0
    %1764 = vmatpush1.bf16.msra.mxu0 %v942
    %1765 = vmatprep.subr.bf16.mxu0 0
    %1766 = vmatpush1.bf16.msra.mxu0 %v963
    %1767 = vmatprep.subr.bf16.mxu0 0
    %1768 = vmatpush1.bf16.msra.mxu0 %v984
    %1769 = vmatprep.subr.bf16.mxu0 0
    %1770 = vmatpush1.bf16.msra.mxu0 %v1005
    %1771 = vmatprep.subr.bf16.mxu0 0
    %1772 = vmatpush1.bf16.msra.mxu0 %v1026
    %1773 = vmatprep.subr.bf16.mxu0 0
    %1774 = vmatpush1.bf16.msra.mxu0 %v1047
    %1775 = vmatprep.subr.bf16.mxu0 0
    %1776 = vmatpush1.bf16.msra.mxu0 %v1068
    %1777 = vmatprep.subr.bf16.mxu0 0
    %1778 = vmatpush1.bf16.msra.mxu0 %v1347
    %1779 = vmatprep.subr.bf16.mxu0 0
    %1780 = vmatpush1.bf16.msra.mxu0 0
    %1781 = vmatprep.subr.bf16.mxu0 0
    %1782 = vmatpush1.bf16.msra.mxu0 0
    %1783 = vmatprep.subr.bf16.mxu0 0
    %1784 = vmatpush1.bf16.msra.mxu0 0
    %1785 = vmatprep.subr.bf16.mxu0 0
    %1786 = vmatpush1.bf16.msra.mxu0 0
    %1787 = vmatprep.subr.bf16.mxu0 0
    %1788 = vmatpush1.bf16.msra.mxu0 0
    %1789 = vmatprep.subr.bf16.mxu0 0
    %1790 = vmatpush1.bf16.msra.mxu0 0
    %1791 = vmatprep.mubr.bf16.mxu0 %v1281
    %1792 = vmatmul.mubr.bf16.gmra.mrb[0].mxu0 %v61
    %v1793 = vpop.f32.mrb[0].mxu0
    %v1794 = vadd.f32 0.0, %v1793
    %v1795 = vpop.f32.mrb[0].mxu0
    %v1796 = vpop.f32.mrb[0].mxu0
    %v1797 = vpop.f32.mrb[0].mxu0
    %1798 = vdwg.mxu0
    %v1799 = vld [vmem:[#allocation5] sm:$0xff]
    %v1800 = vld [vmem:[#allocation5 + $0x8] sm:$0xff]
    %v1801 = vld [vmem:[#allocation5 + $0x10] sm:$0x1f]
    %v1805 = vlaneseq
    %v1806 = vshrl.u32 %v1805, 7
    %v1807 = vsub.s32 0, %v1806
    %v1808 = vrot.slane %v1799, %v1807
    %v1809 = vlaneseq
    %v1810 = vshrl.u32 %v1809, 7
    %v1811 = vsub.s32 1, %v1810
    %v1812 = vrot.slane %v1799, %v1811
    %v1813 = vlaneseq
    %v1814 = vshrl.u32 %v1813, 7
    %v1815 = vsub.s32 2, %v1814
    %v1816 = vrot.slane %v1799, %v1815
    %v1817 = vlaneseq
    %v1818 = vshrl.u32 %v1817, 7
    %v1819 = vsub.s32 3, %v1818
    %v1820 = vrot.slane %v1799, %v1819
    %v1821 = vlaneseq
    %v1822 = vshrl.u32 %v1821, 7
    %v1823 = vsub.s32 4, %v1822
    %v1824 = vrot.slane %v1799, %v1823
    %v1825 = vlaneseq
    %v1826 = vshrl.u32 %v1825, 7
    %v1827 = vsub.s32 5, %v1826
    %v1828 = vrot.slane %v1799, %v1827
    %v1829 = vlaneseq
    %v1830 = vshrl.u32 %v1829, 7
    %v1831 = vsub.s32 6, %v1830
    %v1832 = vrot.slane %v1799, %v1831
    %v1833 = vlaneseq
    %v1834 = vshrl.u32 %v1833, 7
    %v1835 = vsub.s32 7, %v1834
    %v1836 = vrot.slane %v1799, %v1835
    %v1837 = vlaneseq
    %v1838 = vshrl.u32 %v1837, 7
    %v1839 = vsub.s32 0, %v1838
    %v1840 = vrot.slane %v1800, %v1839
    %v1841 = vlaneseq
    %v1842 = vshrl.u32 %v1841, 7
    %v1843 = vsub.s32 1, %v1842
    %v1844 = vrot.slane %v1800, %v1843
    %v1845 = vlaneseq
    %v1846 = vshrl.u32 %v1845, 7
    %v1847 = vsub.s32 2, %v1846
    %v1848 = vrot.slane %v1800, %v1847
    %v1849 = vlaneseq
    %v1850 = vshrl.u32 %v1849, 7
    %v1851 = vsub.s32 3, %v1850
    %v1852 = vrot.slane %v1800, %v1851
    %v1853 = vlaneseq
    %v1854 = vshrl.u32 %v1853, 7
    %v1855 = vsub.s32 4, %v1854
    %v1856 = vrot.slane %v1800, %v1855
    %v1857 = vlaneseq
    %v1858 = vshrl.u32 %v1857, 7
    %v1859 = vsub.s32 5, %v1858
    %v1860 = vrot.slane %v1800, %v1859
    %v1861 = vlaneseq
    %v1862 = vshrl.u32 %v1861, 7
    %v1863 = vsub.s32 6, %v1862
    %v1864 = vrot.slane %v1800, %v1863
    %v1865 = vlaneseq
    %v1866 = vshrl.u32 %v1865, 7
    %v1867 = vsub.s32 7, %v1866
    %v1868 = vrot.slane %v1800, %v1867
    %v1869 = vlaneseq
    %v1870 = vshrl.u32 %v1869, 7
    %v1871 = vsub.s32 0, %v1870
    %v1872 = vrot.slane %v1801, %v1871
    %v1873 = vlaneseq
    %v1874 = vshrl.u32 %v1873, 7
    %v1875 = vsub.s32 1, %v1874
    %v1876 = vrot.slane %v1801, %v1875
    %v1877 = vlaneseq
    %v1878 = vshrl.u32 %v1877, 7
    %v1879 = vsub.s32 2, %v1878
    %v1880 = vrot.slane %v1801, %v1879
    %v1881 = vlaneseq
    %v1882 = vshrl.u32 %v1881, 7
    %v1883 = vsub.s32 3, %v1882
    %v1884 = vrot.slane %v1801, %v1883
    %v1885 = vlaneseq
    %v1886 = vshrl.u32 %v1885, 7
    %v1887 = vsub.s32 4, %v1886
    %v1888 = vrot.slane %v1801, %v1887
    %v1910 = vadd.f32 %v1808, %v1384
    %v1911 = vadd.f32 %v1812, %v1386
    %v1912 = vadd.f32 %v1816, %v1425
    %v1913 = vadd.f32 %v1820, %v1427
    %v1914 = vadd.f32 %v1824, %v1466
    %v1915 = vadd.f32 %v1828, %v1468
    %v1916 = vadd.f32 %v1832, %v1507
    %v1917 = vadd.f32 %v1836, %v1509
    %v1918 = vadd.f32 %v1840, %v1548
    %v1919 = vadd.f32 %v1844, %v1550
    %v1920 = vadd.f32 %v1848, %v1589
    %v1921 = vadd.f32 %v1852, %v1591
    %v1922 = vadd.f32 %v1856, %v1630
    %v1923 = vadd.f32 %v1860, %v1632
    %v1924 = vadd.f32 %v1864, %v1671
    %v1925 = vadd.f32 %v1868, %v1673
    %v1926 = vadd.f32 %v1872, %v1712
    %v1927 = vadd.f32 %v1876, %v1714
    %v1928 = vadd.f32 %v1880, %v1753
    %v1929 = vadd.f32 %v1884, %v1755
    %v1930 = vadd.f32 %v1888, %v1794
    %v1931 = vld [vmem:[%s1] sm:$0xff]
    %v1932 = vld [vmem:[%s1 + $0x8] sm:$0xff]
    %v1933 = vld [vmem:[%s1 + $0x10] sm:$0xff]
    %v1934 = vld [vmem:[%s1 + $0x18] sm:$0xff]
    %v1935 = vld [vmem:[%s1 + $0x20] sm:$0xff]
    %v1936 = vld [vmem:[%s1 + $0x28] sm:$0xff]
    %v1937 = vld [vmem:[%s1 + $0x30] sm:$0xff]
    %v1938 = vld [vmem:[%s1 + $0x38] sm:$0xff]
    %v1939 = vld [vmem:[%s1 + $0x40] sm:$0xff]
    %v1940 = vld [vmem:[%s1 + $0x48] sm:$0xff]
    %v1941 = vld [vmem:[%s1 + $0x50] sm:$0xff]
    %v1942 = vld [vmem:[%s1 + $0x58] sm:$0xff]
    %v1943 = vld [vmem:[%s4] sm:$0xff]
    %v1944 = vld [vmem:[%s4 + $0x8] sm:$0xff]
    %v1945 = vld [vmem:[%s4 + $0x10] sm:$0xff]
    %v1946 = vld [vmem:[%s4 + $0x18] sm:$0xff]
    %v1947 = vld [vmem:[%s4 + $0x20] sm:$0xff]
    %v1948 = vld [vmem:[%s4 + $0x28] sm:$0xff]
    %v1949 = vld [vmem:[%s4 + $0x30] sm:$0xff]
    %v1950 = vld [vmem:[%s4 + $0x38] sm:$0xff]
    %v1951 = vld [vmem:[%s4 + $0x40] sm:$0xff]
    %v1952 = vld [vmem:[%s4 + $0x48] sm:$0xff]
    %v1953 = vld [vmem:[%s4 + $0x50] sm:$0xff]
    %v1954 = vld [vmem:[%s4 + $0x58] sm:$0xff]
    %v1955 = vld [vmem:[%s4 + $0x60] sm:$0xff]
    %v1956 = vld [vmem:[%s4 + $0x68] sm:$0xff]
    %vm1957 = vcmask 130048
    %v1959 = vsel %vm1957, %v1931, 0
    %v1962 = vsel %vm1957, %v1932, 0
    %v1965 = vsel %vm1957, %v1933, 0
    %v1968 = vsel %vm1957, %v1934, 0
    %v1971 = vsel %vm1957, %v1935, 0
    %v1974 = vsel %vm1957, %v1936, 0
    %v1977 = vsel %vm1957, %v1937, 0
    %v1980 = vsel %vm1957, %v1938, 0
    %v1983 = vsel %vm1957, %v1939, 0
    %v1986 = vsel %vm1957, %v1940, 0
    %v1989 = vsel %vm1957, %v1941, 0
    %v1992 = vsel %vm1957, %v1942, 0
    %1994 = vmatprep.subr.mxu0 %v1944
    %1995 = vmatpush1.msra.mxu0 %v1943
    %1996 = vmatprep.subr.mxu0 %v1951
    %1997 = vmatpush1.msra.mxu0 %v1950
    %1998 = vmatprep.subr.mxu0 0.0
    %1999 = vmatpush1.msra.mxu0 0.0
    %2000 = vmatprep.subr.mxu0 0.0
    %2001 = vmatpush1.msra.mxu0 0.0
    %2002 = vmatprep.subr.mxu0 0.0
    %2003 = vmatpush1.msra.mxu0 0.0
    %2004 = vmatprep.subr.mxu0 0.0
    %2005 = vmatpush1.msra.mxu0 0.0
    %2006 = vmatprep.subr.mxu0 0.0
    %2007 = vmatpush1.msra.mxu0 0.0
    %2008 = vmatprep.subr.mxu0 0.0
    %2009 = vmatpush1.msra.mxu0 0.0
    %2010 = vmatprep.subr.mxu0 0.0
    %2011 = vmatpush1.msra.mxu0 0.0
    %2012 = vmatprep.subr.mxu0 0.0
    %2013 = vmatpush1.msra.mxu0 0.0
    %2014 = vmatprep.subr.mxu0 0.0
    %2015 = vmatpush1.msra.mxu0 0.0
    %2016 = vmatprep.subr.mxu0 0.0
    %2017 = vmatpush1.msra.mxu0 0.0
    %2018 = vmatprep.subr.mxu0 0.0
    %2019 = vmatpush1.msra.mxu0 0.0
    %2020 = vmatprep.subr.mxu0 0.0
    %2021 = vmatpush1.msra.mxu0 0.0
    %2022 = vmatprep.subr.mxu0 0.0
    %2023 = vmatpush1.msra.mxu0 0.0
    %2024 = vmatprep.subr.mxu0 0.0
    %2025 = vmatpush1.msra.mxu0 0.0
    %2026 = vmatprep.subr.mxu0 0.0
    %2027 = vmatpush1.msra.mxu0 0.0
    %2028 = vmatprep.subr.mxu0 0.0
    %2029 = vmatpush1.msra.mxu0 0.0
    %2030 = vmatprep.subr.mxu0 0.0
    %2031 = vmatpush1.msra.mxu0 0.0
    %2032 = vmatprep.subr.mxu0 0.0
    %2033 = vmatpush1.msra.mxu0 0.0
    %2034 = vmatprep.subr.mxu0 0.0
    %2035 = vmatpush1.msra.mxu0 0.0
    %2036 = vmatprep.subr.mxu0 0.0
    %2037 = vmatpush1.msra.mxu0 0.0
    %2038 = vmatprep.subr.mxu0 0.0
    %2039 = vmatpush1.msra.mxu0 0.0
    %2040 = vmatprep.subr.mxu0 0.0
    %2041 = vmatpush1.msra.mxu0 0.0
    %2042 = vmatprep.subr.mxu0 0.0
    %2043 = vmatpush1.msra.mxu0 0.0
    %2044 = vmatprep.subr.mxu0 0.0
    %2045 = vmatpush1.msra.mxu0 0.0
    %2046 = vmatprep.subr.mxu0 0.0
    %2047 = vmatpush1.msra.mxu0 0.0
    %2048 = vmatprep.subr.mxu0 0.0
    %2049 = vmatpush1.msra.mxu0 0.0
    %2050 = vmatprep.subr.mxu0 0.0
    %2051 = vmatpush1.msra.mxu0 0.0
    %2052 = vmatprep.subr.mxu0 0.0
    %2053 = vmatpush1.msra.mxu0 0.0
    %2054 = vmatprep.subr.mxu0 0.0
    %2055 = vmatpush1.msra.mxu0 0.0
    %2056 = vmatprep.subr.mxu0 0.0
    %2057 = vmatpush1.msra.mxu0 0.0
    %2058 = vmatprep.mubr.f32.mxu0 0.0
    %2059 = vmatmul.mubr.f32.gmra.mrb[0].mxu0 %v1959
    %v2060 = vpop.f32.mrb[0].mxu0
    %v2061 = vadd.f32 0.0, %v2060
    %v2062 = vpop.f32.mrb[0].mxu0
    %v2063 = vadd.f32 0.0, %v2062
    %2064 = vmatprep.mubr.f32.mxu0 0.0
    %2065 = vmatmul.mubr.f32.gmra.mrb[0].mxu0 %v1962
    %v2066 = vpop.f32.mrb[0].mxu0
    %v2067 = vadd.f32 0.0, %v2066
    %v2068 = vpop.f32.mrb[0].mxu0
    %v2069 = vadd.f32 0.0, %v2068
    %2070 = vmatprep.mubr.f32.mxu0 0.0
    %2071 = vmatmul.mubr.f32.gmra.mrb[0].mxu0 %v1965
    %v2072 = vpop.f32.mrb[0].mxu0
    %v2073 = vadd.f32 0.0, %v2072
    %v2074 = vpop.f32.mrb[0].mxu0
    %v2075 = vadd.f32 0.0, %v2074
    %2076 = vmatprep.mubr.f32.mxu0 0.0
    %2077 = vmatmul.mubr.f32.gmra.mrb[0].mxu0 %v1968
    %v2078 = vpop.f32.mrb[0].mxu0
    %v2079 = vadd.f32 0.0, %v2078
    %v2080 = vpop.f32.mrb[0].mxu0
    %v2081 = vadd.f32 0.0, %v2080
    %2082 = vmatprep.mubr.f32.mxu0 0.0
    %2083 = vmatmul.mubr.f32.gmra.mrb[0].mxu0 %v1971
    %v2084 = vpop.f32.mrb[0].mxu0
    %v2085 = vadd.f32 0.0, %v2084
    %v2086 = vpop.f32.mrb[0].mxu0
    %v2087 = vadd.f32 0.0, %v2086
    %2088 = vmatprep.mubr.f32.mxu0 0.0
    %2089 = vmatmul.mubr.f32.gmra.mrb[0].mxu0 %v1974
    %v2090 = vpop.f32.mrb[0].mxu0
    %v2091 = vadd.f32 0.0, %v2090
    %v2092 = vpop.f32.mrb[0].mxu0
    %v2093 = vadd.f32 0.0, %v2092
    %2094 = vmatprep.mubr.f32.mxu0 0.0
    %2095 = vmatmul.mubr.f32.gmra.mrb[0].mxu0 %v1977
    %v2096 = vpop.f32.mrb[0].mxu0
    %v2097 = vadd.f32 0.0, %v2096
    %v2098 = vpop.f32.mrb[0].mxu0
    %v2099 = vadd.f32 0.0, %v2098
    %2100 = vmatprep.mubr.f32.mxu0 0.0
    %2101 = vmatmul.mubr.f32.gmra.mrb[0].mxu0 %v1980
    %v2102 = vpop.f32.mrb[0].mxu0
    %v2103 = vadd.f32 0.0, %v2102
    %v2104 = vpop.f32.mrb[0].mxu0
    %v2105 = vadd.f32 0.0, %v2104
    %2106 = vmatprep.mubr.f32.mxu0 0.0
    %2107 = vmatmul.mubr.f32.gmra.mrb[0].mxu0 %v1983
    %v2108 = vpop.f32.mrb[0].mxu0
    %v2109 = vadd.f32 0.0, %v2108
    %v2110 = vpop.f32.mrb[0].mxu0
    %v2111 = vadd.f32 0.0, %v2110
    %2112 = vmatprep.mubr.f32.mxu0 0.0
    %2113 = vmatmul.mubr.f32.gmra.mrb[0].mxu0 %v1986
    %v2114 = vpop.f32.mrb[0].mxu0
    %v2115 = vadd.f32 0.0, %v2114
    %v2116 = vpop.f32.mrb[0].mxu0
    %v2117 = vadd.f32 0.0, %v2116
    %2118 = vmatprep.mubr.f32.mxu0 0.0
    %2119 = vmatmul.mubr.f32.gmra.mrb[0].mxu0 %v1989
    %v2120 = vpop.f32.mrb[0].mxu0
    %v2121 = vadd.f32 0.0, %v2120
    %v2122 = vpop.f32.mrb[0].mxu0
    %v2123 = vadd.f32 0.0, %v2122
    %2124 = vmatprep.mubr.f32.mxu0 0.0
    %2125 = vmatmul.mubr.f32.gmra.mrb[0].mxu0 %v1992
    %v2126 = vpop.f32.mrb[0].mxu0
    %v2127 = vadd.f32 0.0, %v2126
    %v2128 = vpop.f32.mrb[0].mxu0
    %v2129 = vadd.f32 0.0, %v2128
    %2130 = vdwg.mxu0
    %2131 = vmatprep.subr.mxu0 %v1946
    %2132 = vmatpush1.msra.mxu0 %v1945
    %2133 = vmatprep.subr.mxu0 %v1953
    %2134 = vmatpush1.msra.mxu0 %v1952
    %2135 = vmatprep.subr.mxu0 0.0
    %2136 = vmatpush1.msra.mxu0 0.0
    %2137 = vmatprep.subr.mxu0 0.0
    %2138 = vmatpush1.msra.mxu0 0.0
    %2139 = vmatprep.subr.mxu0 0.0
    %2140 = vmatpush1.msra.mxu0 0.0
    %2141 = vmatprep.subr.mxu0 0.0
    %2142 = vmatpush1.msra.mxu0 0.0
    %2143 = vmatprep.subr.mxu0 0.0
    %2144 = vmatpush1.msra.mxu0 0.0
    %2145 = vmatprep.subr.mxu0 0.0
    %2146 = vmatpush1.msra.mxu0 0.0
    %2147 = vmatprep.subr.mxu0 0.0
    %2148 = vmatpush1.msra.mxu0 0.0
    %2149 = vmatprep.subr.mxu0 0.0
    %2150 = vmatpush1.msra.mxu0 0.0
    %2151 = vmatprep.subr.mxu0 0.0
    %2152 = vmatpush1.msra.mxu0 0.0
    %2153 = vmatprep.subr.mxu0 0.0
    %2154 = vmatpush1.msra.mxu0 0.0
    %2155 = vmatprep.subr.mxu0 0.0
    %2156 = vmatpush1.msra.mxu0 0.0
    %2157 = vmatprep.subr.mxu0 0.0
    %2158 = vmatpush1.msra.mxu0 0.0
    %2159 = vmatprep.subr.mxu0 0.0
    %2160 = vmatpush1.msra.mxu0 0.0
    %2161 = vmatprep.subr.mxu0 0.0
    %2162 = vmatpush1.msra.mxu0 0.0
    %2163 = vmatprep.subr.mxu0 0.0
    %2164 = vmatpush1.msra.mxu0 0.0
    %2165 = vmatprep.subr.mxu0 0.0
    %2166 = vmatpush1.msra.mxu0 0.0
    %2167 = vmatprep.subr.mxu0 0.0
    %2168 = vmatpush1.msra.mxu0 0.0
    %2169 = vmatprep.subr.mxu0 0.0
    %2170 = vmatpush1.msra.mxu0 0.0
    %2171 = vmatprep.subr.mxu0 0.0
    %2172 = vmatpush1.msra.mxu0 0.0
    %2173 = vmatprep.subr.mxu0 0.0
    %2174 = vmatpush1.msra.mxu0 0.0
    %2175 = vmatprep.subr.mxu0 0.0
    %2176 = vmatpush1.msra.mxu0 0.0
    %2177 = vmatprep.subr.mxu0 0.0
    %2178 = vmatpush1.msra.mxu0 0.0
    %2179 = vmatprep.subr.mxu0 0.0
    %2180 = vmatpush1.msra.mxu0 0.0
    %2181 = vmatprep.subr.mxu0 0.0
    %2182 = vmatpush1.msra.mxu0 0.0
    %2183 = vmatprep.subr.mxu0 0.0
    %2184 = vmatpush1.msra.mxu0 0.0
    %2185 = vmatprep.subr.mxu0 0.0
    %2186 = vmatpush1.msra.mxu0 0.0
    %2187 = vmatprep.subr.mxu0 0.0
    %2188 = vmatpush1.msra.mxu0 0.0
    %2189 = vmatprep.subr.mxu0 0.0
    %2190 = vmatpush1.msra.mxu0 0.0
    %2191 = vmatprep.subr.mxu0 0.0
    %2192 = vmatpush1.msra.mxu0 0.0
    %2193 = vmatprep.subr.mxu0 0.0
    %2194 = vmatpush1.msra.mxu0 0.0
    %2195 = vmatprep.mubr.f32.mxu0 0.0
    %2196 = vmatmul.mubr.f32.gmra.mrb[0].mxu0 %v1959
    %v2197 = vpop.f32.mrb[0].mxu0
    %v2198 = vadd.f32 0.0, %v2197
    %v2199 = vpop.f32.mrb[0].mxu0
    %v2200 = vadd.f32 0.0, %v2199
    %2201 = vmatprep.mubr.f32.mxu0 0.0
    %2202 = vmatmul.mubr.f32.gmra.mrb[0].mxu0 %v1962
    %v2203 = vpop.f32.mrb[0].mxu0
    %v2204 = vadd.f32 0.0, %v2203
    %v2205 = vpop.f32.mrb[0].mxu0
    %v2206 = vadd.f32 0.0, %v2205
    %2207 = vmatprep.mubr.f32.mxu0 0.0
    %2208 = vmatmul.mubr.f32.gmra.mrb[0].mxu0 %v1965
    %v2209 = vpop.f32.mrb[0].mxu0
    %v2210 = vadd.f32 0.0, %v2209
    %v2211 = vpop.f32.mrb[0].mxu0
    %v2212 = vadd.f32 0.0, %v2211
    %2213 = vmatprep.mubr.f32.mxu0 0.0
    %2214 = vmatmul.mubr.f32.gmra.mrb[0].mxu0 %v1968
    %v2215 = vpop.f32.mrb[0].mxu0
    %v2216 = vadd.f32 0.0, %v2215
    %v2217 = vpop.f32.mrb[0].mxu0
    %v2218 = vadd.f32 0.0, %v2217
    %2219 = vmatprep.mubr.f32.mxu0 0.0
    %2220 = vmatmul.mubr.f32.gmra.mrb[0].mxu0 %v1971
    %v2221 = vpop.f32.mrb[0].mxu0
    %v2222 = vadd.f32 0.0, %v2221
    %v2223 = vpop.f32.mrb[0].mxu0
    %v2224 = vadd.f32 0.0, %v2223
    %2225 = vmatprep.mubr.f32.mxu0 0.0
    %2226 = vmatmul.mubr.f32.gmra.mrb[0].mxu0 %v1974
    %v2227 = vpop.f32.mrb[0].mxu0
    %v2228 = vadd.f32 0.0, %v2227
    %v2229 = vpop.f32.mrb[0].mxu0
    %v2230 = vadd.f32 0.0, %v2229
    %2231 = vmatprep.mubr.f32.mxu0 0.0
    %2232 = vmatmul.mubr.f32.gmra.mrb[0].mxu0 %v1977
    %v2233 = vpop.f32.mrb[0].mxu0
    %v2234 = vadd.f32 0.0, %v2233
    %v2235 = vpop.f32.mrb[0].mxu0
    %v2236 = vadd.f32 0.0, %v2235
    %2237 = vmatprep.mubr.f32.mxu0 0.0
    %2238 = vmatmul.mubr.f32.gmra.mrb[0].mxu0 %v1980
    %v2239 = vpop.f32.mrb[0].mxu0
    %v2240 = vadd.f32 0.0, %v2239
    %v2241 = vpop.f32.mrb[0].mxu0
    %v2242 = vadd.f32 0.0, %v2241
    %2243 = vmatprep.mubr.f32.mxu0 0.0
    %2244 = vmatmul.mubr.f32.gmra.mrb[0].mxu0 %v1983
    %v2245 = vpop.f32.mrb[0].mxu0
    %v2246 = vadd.f32 0.0, %v2245
    %v2247 = vpop.f32.mrb[0].mxu0
    %v2248 = vadd.f32 0.0, %v2247
    %2249 = vmatprep.mubr.f32.mxu0 0.0
    %2250 = vmatmul.mubr.f32.gmra.mrb[0].mxu0 %v1986
    %v2251 = vpop.f32.mrb[0].mxu0
    %v2252 = vadd.f32 0.0, %v2251
    %v2253 = vpop.f32.mrb[0].mxu0
    %v2254 = vadd.f32 0.0, %v2253
    %2255 = vmatprep.mubr.f32.mxu0 0.0
    %2256 = vmatmul.mubr.f32.gmra.mrb[0].mxu0 %v1989
    %v2257 = vpop.f32.mrb[0].mxu0
    %v2258 = vadd.f32 0.0, %v2257
    %v2259 = vpop.f32.mrb[0].mxu0
    %v2260 = vadd.f32 0.0, %v2259
    %2261 = vmatprep.mubr.f32.mxu0 0.0
    %2262 = vmatmul.mubr.f32.gmra.mrb[0].mxu0 %v1992
    %v2263 = vpop.f32.mrb[0].mxu0
    %v2264 = vadd.f32 0.0, %v2263
    %v2265 = vpop.f32.mrb[0].mxu0
    %v2266 = vadd.f32 0.0, %v2265
    %2267 = vdwg.mxu0
    %2268 = vmatprep.subr.mxu0 %v1948
    %2269 = vmatpush1.msra.mxu0 %v1947
    %2270 = vmatprep.subr.mxu0 %v1955
    %2271 = vmatpush1.msra.mxu0 %v1954
    %2272 = vmatprep.subr.mxu0 0.0
    %2273 = vmatpush1.msra.mxu0 0.0
    %2274 = vmatprep.subr.mxu0 0.0
    %2275 = vmatpush1.msra.mxu0 0.0
    %2276 = vmatprep.subr.mxu0 0.0
    %2277 = vmatpush1.msra.mxu0 0.0
    %2278 = vmatprep.subr.mxu0 0.0
    %2279 = vmatpush1.msra.mxu0 0.0
    %2280 = vmatprep.subr.mxu0 0.0
    %2281 = vmatpush1.msra.mxu0 0.0
    %2282 = vmatprep.subr.mxu0 0.0
    %2283 = vmatpush1.msra.mxu0 0.0
    %2284 = vmatprep.subr.mxu0 0.0
    %2285 = vmatpush1.msra.mxu0 0.0
    %2286 = vmatprep.subr.mxu0 0.0
    %2287 = vmatpush1.msra.mxu0 0.0
    %2288 = vmatprep.subr.mxu0 0.0
    %2289 = vmatpush1.msra.mxu0 0.0
    %2290 = vmatprep.subr.mxu0 0.0
    %2291 = vmatpush1.msra.mxu0 0.0
    %2292 = vmatprep.subr.mxu0 0.0
    %2293 = vmatpush1.msra.mxu0 0.0
    %2294 = vmatprep.subr.mxu0 0.0
    %2295 = vmatpush1.msra.mxu0 0.0
    %2296 = vmatprep.subr.mxu0 0.0
    %2297 = vmatpush1.msra.mxu0 0.0
    %2298 = vmatprep.subr.mxu0 0.0
    %2299 = vmatpush1.msra.mxu0 0.0
    %2300 = vmatprep.subr.mxu0 0.0
    %2301 = vmatpush1.msra.mxu0 0.0
    %2302 = vmatprep.subr.mxu0 0.0
    %2303 = vmatpush1.msra.mxu0 0.0
    %2304 = vmatprep.subr.mxu0 0.0
    %2305 = vmatpush1.msra.mxu0 0.0
    %2306 = vmatprep.subr.mxu0 0.0
    %2307 = vmatpush1.msra.mxu0 0.0
    %2308 = vmatprep.subr.mxu0 0.0
    %2309 = vmatpush1.msra.mxu0 0.0
    %2310 = vmatprep.subr.mxu0 0.0
    %2311 = vmatpush1.msra.mxu0 0.0
    %2312 = vmatprep.subr.mxu0 0.0
    %2313 = vmatpush1.msra.mxu0 0.0
    %2314 = vmatprep.subr.mxu0 0.0
    %2315 = vmatpush1.msra.mxu0 0.0
    %2316 = vmatprep.subr.mxu0 0.0
    %2317 = vmatpush1.msra.mxu0 0.0
    %2318 = vmatprep.subr.mxu0 0.0
    %2319 = vmatpush1.msra.mxu0 0.0
    %2320 = vmatprep.subr.mxu0 0.0
    %2321 = vmatpush1.msra.mxu0 0.0
    %2322 = vmatprep.subr.mxu0 0.0
    %2323 = vmatpush1.msra.mxu0 0.0
    %2324 = vmatprep.subr.mxu0 0.0
    %2325 = vmatpush1.msra.mxu0 0.0
    %2326 = vmatprep.subr.mxu0 0.0
    %2327 = vmatpush1.msra.mxu0 0.0
    %2328 = vmatprep.subr.mxu0 0.0
    %2329 = vmatpush1.msra.mxu0 0.0
    %2330 = vmatprep.subr.mxu0 0.0
    %2331 = vmatpush1.msra.mxu0 0.0
    %2332 = vmatprep.mubr.f32.mxu0 0.0
    %2333 = vmatmul.mubr.f32.gmra.mrb[0].mxu0 %v1959
    %v2334 = vpop.f32.mrb[0].mxu0
    %v2335 = vadd.f32 0.0, %v2334
    %v2336 = vpop.f32.mrb[0].mxu0
    %v2337 = vadd.f32 0.0, %v2336
    %2338 = vmatprep.mubr.f32.mxu0 0.0
    %2339 = vmatmul.mubr.f32.gmra.mrb[0].mxu0 %v1962
    %v2340 = vpop.f32.mrb[0].mxu0
    %v2341 = vadd.f32 0.0, %v2340
    %v2342 = vpop.f32.mrb[0].mxu0
    %v2343 = vadd.f32 0.0, %v2342
    %2344 = vmatprep.mubr.f32.mxu0 0.0
    %2345 = vmatmul.mubr.f32.gmra.mrb[0].mxu0 %v1965
    %v2346 = vpop.f32.mrb[0].mxu0
    %v2347 = vadd.f32 0.0, %v2346
    %v2348 = vpop.f32.mrb[0].mxu0
    %v2349 = vadd.f32 0.0, %v2348
    %2350 = vmatprep.mubr.f32.mxu0 0.0
    %2351 = vmatmul.mubr.f32.gmra.mrb[0].mxu0 %v1968
    %v2352 = vpop.f32.mrb[0].mxu0
    %v2353 = vadd.f32 0.0, %v2352
    %v2354 = vpop.f32.mrb[0].mxu0
    %v2355 = vadd.f32 0.0, %v2354
    %2356 = vmatprep.mubr.f32.mxu0 0.0
    %2357 = vmatmul.mubr.f32.gmra.mrb[0].mxu0 %v1971
    %v2358 = vpop.f32.mrb[0].mxu0
    %v2359 = vadd.f32 0.0, %v2358
    %v2360 = vpop.f32.mrb[0].mxu0
    %v2361 = vadd.f32 0.0, %v2360
    %2362 = vmatprep.mubr.f32.mxu0 0.0
    %2363 = vmatmul.mubr.f32.gmra.mrb[0].mxu0 %v1974
    %v2364 = vpop.f32.mrb[0].mxu0
    %v2365 = vadd.f32 0.0, %v2364
    %v2366 = vpop.f32.mrb[0].mxu0
    %v2367 = vadd.f32 0.0, %v2366
    %2368 = vmatprep.mubr.f32.mxu0 0.0
    %2369 = vmatmul.mubr.f32.gmra.mrb[0].mxu0 %v1977
    %v2370 = vpop.f32.mrb[0].mxu0
    %v2371 = vadd.f32 0.0, %v2370
    %v2372 = vpop.f32.mrb[0].mxu0
    %v2373 = vadd.f32 0.0, %v2372
    %2374 = vmatprep.mubr.f32.mxu0 0.0
    %2375 = vmatmul.mubr.f32.gmra.mrb[0].mxu0 %v1980
    %v2376 = vpop.f32.mrb[0].mxu0
    %v2377 = vadd.f32 0.0, %v2376
    %v2378 = vpop.f32.mrb[0].mxu0
    %v2379 = vadd.f32 0.0, %v2378
    %2380 = vmatprep.mubr.f32.mxu0 0.0
    %2381 = vmatmul.mubr.f32.gmra.mrb[0].mxu0 %v1983
    %v2382 = vpop.f32.mrb[0].mxu0
    %v2383 = vadd.f32 0.0, %v2382
    %v2384 = vpop.f32.mrb[0].mxu0
    %v2385 = vadd.f32 0.0, %v2384
    %2386 = vmatprep.mubr.f32.mxu0 0.0
    %2387 = vmatmul.mubr.f32.gmra.mrb[0].mxu0 %v1986
    %v2388 = vpop.f32.mrb[0].mxu0
    %v2389 = vadd.f32 0.0, %v2388
    %v2390 = vpop.f32.mrb[0].mxu0
    %v2391 = vadd.f32 0.0, %v2390
    %2392 = vmatprep.mubr.f32.mxu0 0.0
    %2393 = vmatmul.mubr.f32.gmra.mrb[0].mxu0 %v1989
    %v2394 = vpop.f32.mrb[0].mxu0
    %v2395 = vadd.f32 0.0, %v2394
    %v2396 = vpop.f32.mrb[0].mxu0
    %v2397 = vadd.f32 0.0, %v2396
    %2398 = vmatprep.mubr.f32.mxu0 0.0
    %2399 = vmatmul.mubr.f32.gmra.mrb[0].mxu0 %v1992
    %v2400 = vpop.f32.mrb[0].mxu0
    %v2401 = vadd.f32 0.0, %v2400
    %v2402 = vpop.f32.mrb[0].mxu0
    %v2403 = vadd.f32 0.0, %v2402
    %2404 = vdwg.mxu0
    %2405 = vmatprep.subr.mxu0 0.0
    %2406 = vmatpush1.msra.mxu0 %v1949
    %2407 = vmatprep.subr.mxu0 0.0
    %2408 = vmatpush1.msra.mxu0 %v1956
    %2409 = vmatprep.subr.mxu0 0.0
    %2410 = vmatpush1.msra.mxu0 0.0
    %2411 = vmatprep.subr.mxu0 0.0
    %2412 = vmatpush1.msra.mxu0 0.0
    %2413 = vmatprep.subr.mxu0 0.0
    %2414 = vmatpush1.msra.mxu0 0.0
    %2415 = vmatprep.subr.mxu0 0.0
    %2416 = vmatpush1.msra.mxu0 0.0
    %2417 = vmatprep.subr.mxu0 0.0
    %2418 = vmatpush1.msra.mxu0 0.0
    %2419 = vmatprep.subr.mxu0 0.0
    %2420 = vmatpush1.msra.mxu0 0.0
    %2421 = vmatprep.subr.mxu0 0.0
    %2422 = vmatpush1.msra.mxu0 0.0
    %2423 = vmatprep.subr.mxu0 0.0
    %2424 = vmatpush1.msra.mxu0 0.0
    %2425 = vmatprep.subr.mxu0 0.0
    %2426 = vmatpush1.msra.mxu0 0.0
    %2427 = vmatprep.subr.mxu0 0.0
    %2428 = vmatpush1.msra.mxu0 0.0
    %2429 = vmatprep.subr.mxu0 0.0
    %2430 = vmatpush1.msra.mxu0 0.0
    %2431 = vmatprep.subr.mxu0 0.0
    %2432 = vmatpush1.msra.mxu0 0.0
    %2433 = vmatprep.subr.mxu0 0.0
    %2434 = vmatpush1.msra.mxu0 0.0
    %2435 = vmatprep.subr.mxu0 0.0
    %2436 = vmatpush1.msra.mxu0 0.0
    %2437 = vmatprep.subr.mxu0 0.0
    %2438 = vmatpush1.msra.mxu0 0.0
    %2439 = vmatprep.subr.mxu0 0.0
    %2440 = vmatpush1.msra.mxu0 0.0
    %2441 = vmatprep.subr.mxu0 0.0
    %2442 = vmatpush1.msra.mxu0 0.0
    %2443 = vmatprep.subr.mxu0 0.0
    %2444 = vmatpush1.msra.mxu0 0.0
    %2445 = vmatprep.subr.mxu0 0.0
    %2446 = vmatpush1.msra.mxu0 0.0
    %2447 = vmatprep.subr.mxu0 0.0
    %2448 = vmatpush1.msra.mxu0 0.0
    %2449 = vmatprep.subr.mxu0 0.0
    %2450 = vmatpush1.msra.mxu0 0.0
    %2451 = vmatprep.subr.mxu0 0.0
    %2452 = vmatpush1.msra.mxu0 0.0
    %2453 = vmatprep.subr.mxu0 0.0
    %2454 = vmatpush1.msra.mxu0 0.0
    %2455 = vmatprep.subr.mxu0 0.0
    %2456 = vmatpush1.msra.mxu0 0.0
    %2457 = vmatprep.subr.mxu0 0.0
    %2458 = vmatpush1.msra.mxu0 0.0
    %2459 = vmatprep.subr.mxu0 0.0
    %2460 = vmatpush1.msra.mxu0 0.0
    %2461 = vmatprep.subr.mxu0 0.0
    %2462 = vmatpush1.msra.mxu0 0.0
    %2463 = vmatprep.subr.mxu0 0.0
    %2464 = vmatpush1.msra.mxu0 0.0
    %2465 = vmatprep.subr.mxu0 0.0
    %2466 = vmatpush1.msra.mxu0 0.0
    %2467 = vmatprep.subr.mxu0 0.0
    %2468 = vmatpush1.msra.mxu0 0.0
    %2469 = vmatprep.mubr.f32.mxu0 0.0
    %2470 = vmatmul.mubr.f32.gmra.mrb[0].mxu0 %v1959
    %v2471 = vpop.f32.mrb[0].mxu0
    %v2472 = vadd.f32 0.0, %v2471
    %v2473 = vpop.f32.mrb[0].mxu0
    %2474 = vmatprep.mubr.f32.mxu0 0.0
    %2475 = vmatmul.mubr.f32.gmra.mrb[0].mxu0 %v1962
    %v2476 = vpop.f32.mrb[0].mxu0
    %v2477 = vadd.f32 0.0, %v2476
    %v2478 = vpop.f32.mrb[0].mxu0
    %2479 = vmatprep.mubr.f32.mxu0 0.0
    %2480 = vmatmul.mubr.f32.gmra.mrb[0].mxu0 %v1965
    %v2481 = vpop.f32.mrb[0].mxu0
    %v2482 = vadd.f32 0.0, %v2481
    %v2483 = vpop.f32.mrb[0].mxu0
    %2484 = vmatprep.mubr.f32.mxu0 0.0
    %2485 = vmatmul.mubr.f32.gmra.mrb[0].mxu0 %v1968
    %v2486 = vpop.f32.mrb[0].mxu0
    %v2487 = vadd.f32 0.0, %v2486
    %v2488 = vpop.f32.mrb[0].mxu0
    %2489 = vmatprep.mubr.f32.mxu0 0.0
    %2490 = vmatmul.mubr.f32.gmra.mrb[0].mxu0 %v1971
    %v2491 = vpop.f32.mrb[0].mxu0
    %v2492 = vadd.f32 0.0, %v2491
    %v2493 = vpop.f32.mrb[0].mxu0
    %2494 = vmatprep.mubr.f32.mxu0 0.0
    %2495 = vmatmul.mubr.f32.gmra.mrb[0].mxu0 %v1974
    %v2496 = vpop.f32.mrb[0].mxu0
    %v2497 = vadd.f32 0.0, %v2496
    %v2498 = vpop.f32.mrb[0].mxu0
    %2499 = vmatprep.mubr.f32.mxu0 0.0
    %2500 = vmatmul.mubr.f32.gmra.mrb[0].mxu0 %v1977
    %v2501 = vpop.f32.mrb[0].mxu0
    %v2502 = vadd.f32 0.0, %v2501
    %v2503 = vpop.f32.mrb[0].mxu0
    %2504 = vmatprep.mubr.f32.mxu0 0.0
    %2505 = vmatmul.mubr.f32.gmra.mrb[0].mxu0 %v1980
    %v2506 = vpop.f32.mrb[0].mxu0
    %v2507 = vadd.f32 0.0, %v2506
    %v2508 = vpop.f32.mrb[0].mxu0
    %2509 = vmatprep.mubr.f32.mxu0 0.0
    %2510 = vmatmul.mubr.f32.gmra.mrb[0].mxu0 %v1983
    %v2511 = vpop.f32.mrb[0].mxu0
    %v2512 = vadd.f32 0.0, %v2511
    %v2513 = vpop.f32.mrb[0].mxu0
    %2514 = vmatprep.mubr.f32.mxu0 0.0
    %2515 = vmatmul.mubr.f32.gmra.mrb[0].mxu0 %v1986
    %v2516 = vpop.f32.mrb[0].mxu0
    %v2517 = vadd.f32 0.0, %v2516
    %v2518 = vpop.f32.mrb[0].mxu0
    %2519 = vmatprep.mubr.f32.mxu0 0.0
    %2520 = vmatmul.mubr.f32.gmra.mrb[0].mxu0 %v1989
    %v2521 = vpop.f32.mrb[0].mxu0
    %v2522 = vadd.f32 0.0, %v2521
    %v2523 = vpop.f32.mrb[0].mxu0
    %2524 = vmatprep.mubr.f32.mxu0 0.0
    %2525 = vmatmul.mubr.f32.gmra.mrb[0].mxu0 %v1992
    %v2526 = vpop.f32.mrb[0].mxu0
    %v2527 = vadd.f32 0.0, %v2526
    %v2528 = vpop.f32.mrb[0].mxu0
    %2529 = vdwg.mxu0
    %v2530 = vmul.f32 %v2061, %v1910
    %v2531 = vmul.f32 %v2063, %v1911
    %v2532 = vmul.f32 %v2198, %v1912
    %v2533 = vmul.f32 %v2200, %v1913
    %v2534 = vmul.f32 %v2335, %v1914
    %v2535 = vmul.f32 %v2337, %v1915
    %v2536 = vmul.f32 %v2472, %v1916
    %v2537 = vadd.f32 %v2079, %v2530
    %v2538 = vadd.f32 %v2081, %v2531
    %v2539 = vadd.f32 %v2216, %v2532
    %v2540 = vadd.f32 %v2218, %v2533
    %v2541 = vadd.f32 %v2353, %v2534
    %v2542 = vadd.f32 %v2355, %v2535
    %v2543 = vadd.f32 %v2487, %v2536
    %v2544 = vmul.f32 %v2067, %v1917
    %v2545 = vmul.f32 %v2069, %v1918
    %v2546 = vmul.f32 %v2204, %v1919
    %v2547 = vmul.f32 %v2206, %v1920
    %v2548 = vmul.f32 %v2341, %v1921
    %v2549 = vmul.f32 %v2343, %v1922
    %v2550 = vmul.f32 %v2477, %v1923
    %v2551 = vadd.f32 %v2537, %v2544
    %v2552 = vadd.f32 %v2538, %v2545
    %v2553 = vadd.f32 %v2539, %v2546
    %v2554 = vadd.f32 %v2540, %v2547
    %v2555 = vadd.f32 %v2541, %v2548
    %v2556 = vadd.f32 %v2542, %v2549
    %v2557 = vadd.f32 %v2543, %v2550
    %v2558 = vmul.f32 %v2073, %v1924
    %v2559 = vmul.f32 %v2075, %v1925
    %v2560 = vmul.f32 %v2210, %v1926
    %v2561 = vmul.f32 %v2212, %v1927
    %v2562 = vmul.f32 %v2347, %v1928
    %v2563 = vmul.f32 %v2349, %v1929
    %v2564 = vmul.f32 %v2482, %v1930
    %v2565 = vadd.f32 %v2551, %v2558
    %v2566 = vadd.f32 %v2552, %v2559
    %v2567 = vadd.f32 %v2553, %v2560
    %v2568 = vadd.f32 %v2554, %v2561
    %v2569 = vadd.f32 %v2555, %v2562
    %v2570 = vadd.f32 %v2556, %v2563
    %v2571 = vadd.f32 %v2557, %v2564
    %2572 = vst [vmem:[#allocation8] sm:$0xff] %v2565
    %2573 = vst [vmem:[#allocation8 + $0x8] sm:$0xff] %v2566
    %2574 = vst [vmem:[#allocation8 + $0x10] sm:$0xff] %v2567
    %2575 = vst [vmem:[#allocation8 + $0x18] sm:$0xff] %v2568
    %2576 = vst [vmem:[#allocation8 + $0x20] sm:$0xff] %v2569
    %2577 = vst [vmem:[#allocation8 + $0x28] sm:$0xff] %v2570
    %2578 = vst [vmem:[#allocation8 + $0x30] sm:$0xff] %v2571
    %v2579 = vmul.f32 %v2085, %v1910
    %v2580 = vmul.f32 %v2087, %v1911
    %v2581 = vmul.f32 %v2222, %v1912
    %v2582 = vmul.f32 %v2224, %v1913
    %v2583 = vmul.f32 %v2359, %v1914
    %v2584 = vmul.f32 %v2361, %v1915
    %v2585 = vmul.f32 %v2492, %v1916
    %v2586 = vadd.f32 %v2103, %v2579
    %v2587 = vadd.f32 %v2105, %v2580
    %v2588 = vadd.f32 %v2240, %v2581
    %v2589 = vadd.f32 %v2242, %v2582
    %v2590 = vadd.f32 %v2377, %v2583
    %v2591 = vadd.f32 %v2379, %v2584
    %v2592 = vadd.f32 %v2507, %v2585
    %v2593 = vmul.f32 %v2091, %v1917
    %v2594 = vmul.f32 %v2093, %v1918
    %v2595 = vmul.f32 %v2228, %v1919
    %v2596 = vmul.f32 %v2230, %v1920
    %v2597 = vmul.f32 %v2365, %v1921
    %v2598 = vmul.f32 %v2367, %v1922
    %v2599 = vmul.f32 %v2497, %v1923
    %v2600 = vadd.f32 %v2586, %v2593
    %v2601 = vadd.f32 %v2587, %v2594
    %v2602 = vadd.f32 %v2588, %v2595
    %v2603 = vadd.f32 %v2589, %v2596
    %v2604 = vadd.f32 %v2590, %v2597
    %v2605 = vadd.f32 %v2591, %v2598
    %v2606 = vadd.f32 %v2592, %v2599
    %v2607 = vmul.f32 %v2097, %v1924
    %v2608 = vmul.f32 %v2099, %v1925
    %v2609 = vmul.f32 %v2234, %v1926
    %v2610 = vmul.f32 %v2236, %v1927
    %v2611 = vmul.f32 %v2371, %v1928
    %v2612 = vmul.f32 %v2373, %v1929
    %v2613 = vmul.f32 %v2502, %v1930
    %v2614 = vadd.f32 %v2600, %v2607
    %v2615 = vadd.f32 %v2601, %v2608
    %v2616 = vadd.f32 %v2602, %v2609
    %v2617 = vadd.f32 %v2603, %v2610
    %v2618 = vadd.f32 %v2604, %v2611
    %v2619 = vadd.f32 %v2605, %v2612
    %v2620 = vadd.f32 %v2606, %v2613
    %2621 = vst [vmem:[#allocation8 + $0x38] sm:$0xff] %v2614
    %2622 = vst [vmem:[#allocation8 + $0x40] sm:$0xff] %v2615
    %2623 = vst [vmem:[#allocation8 + $0x48] sm:$0xff] %v2616
    %2624 = vst [vmem:[#allocation8 + $0x50] sm:$0xff] %v2617
    %2625 = vst [vmem:[#allocation8 + $0x58] sm:$0xff] %v2618
    %2626 = vst [vmem:[#allocation8 + $0x60] sm:$0xff] %v2619
    %2627 = vst [vmem:[#allocation8 + $0x68] sm:$0xff] %v2620
    %v2628 = vmul.f32 %v2109, %v1910
    %v2629 = vmul.f32 %v2111, %v1911
    %v2630 = vmul.f32 %v2246, %v1912
    %v2631 = vmul.f32 %v2248, %v1913
    %v2632 = vmul.f32 %v2383, %v1914
    %v2633 = vmul.f32 %v2385, %v1915
    %v2634 = vmul.f32 %v2512, %v1916
    %v2635 = vadd.f32 %v2127, %v2628
    %v2636 = vadd.f32 %v2129, %v2629
    %v2637 = vadd.f32 %v2264, %v2630
    %v2638 = vadd.f32 %v2266, %v2631
    %v2639 = vadd.f32 %v2401, %v2632
    %v2640 = vadd.f32 %v2403, %v2633
    %v2641 = vadd.f32 %v2527, %v2634
    %v2642 = vmul.f32 %v2115, %v1917
    %v2643 = vmul.f32 %v2117, %v1918
    %v2644 = vmul.f32 %v2252, %v1919
    %v2645 = vmul.f32 %v2254, %v1920
    %v2646 = vmul.f32 %v2389, %v1921
    %v2647 = vmul.f32 %v2391, %v1922
    %v2648 = vmul.f32 %v2517, %v1923
    %v2649 = vadd.f32 %v2635, %v2642
    %v2650 = vadd.f32 %v2636, %v2643
    %v2651 = vadd.f32 %v2637, %v2644
    %v2652 = vadd.f32 %v2638, %v2645
    %v2653 = vadd.f32 %v2639, %v2646
    %v2654 = vadd.f32 %v2640, %v2647
    %v2655 = vadd.f32 %v2641, %v2648
    %v2656 = vmul.f32 %v2121, %v1924
    %v2657 = vmul.f32 %v2123, %v1925
    %v2658 = vmul.f32 %v2258, %v1926
    %v2659 = vmul.f32 %v2260, %v1927
    %v2660 = vmul.f32 %v2395, %v1928
    %v2661 = vmul.f32 %v2397, %v1929
    %v2662 = vmul.f32 %v2522, %v1930
    %v2663 = vadd.f32 %v2649, %v2656
    %v2664 = vadd.f32 %v2650, %v2657
    %v2665 = vadd.f32 %v2651, %v2658
    %v2666 = vadd.f32 %v2652, %v2659
    %v2667 = vadd.f32 %v2653, %v2660
    %v2668 = vadd.f32 %v2654, %v2661
    %v2669 = vadd.f32 %v2655, %v2662
    %2670 = vst [vmem:[#allocation8 + $0x70] sm:$0xff] %v2663
    %2671 = vst [vmem:[#allocation8 + $0x78] sm:$0xff] %v2664
    %2672 = vst [vmem:[#allocation8 + $0x80] sm:$0xff] %v2665
    %2673 = vst [vmem:[#allocation8 + $0x88] sm:$0xff] %v2666
    %2674 = vst [vmem:[#allocation8 + $0x90] sm:$0xff] %v2667
    %2675 = vst [vmem:[#allocation8 + $0x98] sm:$0xff] %v2668
    %2676 = vst [vmem:[#allocation8 + $0xa0] sm:$0xff] %v2669
    // Predicated region
    $region34: #{tpu_custom_call.1} parent=1 // pred_check
      _
    $region35: #{tpu_custom_call.1} parent=1 // pred_check_branch
      %2678 = sbr.rel (0) target = $region37
    $region36: #{tpu_custom_call.1} parent=1 // pred_region
      %s2680 = ssub.s32 2688, 2688
      %2681 = vsyncadd [#allocation4], %s2680
      %s2683 = sshll.u32 [#allocation8], 4
      %s2684 = int_to_ptr.vmem [resolvable:$true] %s2683
      %2686 = dma.vmem_to_hbm [thread:$0]  %s2684, 2688, %s5, [#allocation4]
    $region37: #{tpu_custom_call.1} parent=1 // pred_fallthru
      _
    // Predicated region
    $region38: #{tpu_custom_call.1} parent=1 // pred_check
      _
    $region39: #{tpu_custom_call.1} parent=1 // pred_check_branch
      %2688 = sbr.rel (0) target = $region41
    $region40: #{tpu_custom_call.1} parent=1 // pred_region
      %2689 = dma.done [#allocation4], 2688
    $region41: #{tpu_custom_call.1} parent=1 // pred_fallthru
      _
    %2690 = vsyncpa [#allocation3], 1
    %2691 = vsyncpa [#allocation6], 1
    %2692 = vsyncpa [#allocation4], 1

</llo_original>
